<compile_context>
chip_gen: v7x
topology: tpu7x:2x2x1
jax: 0.10.0
libtpu: 0.0.40
codegen_flags: <defaults>
</compile_context>

<pallas_src>
import functools

import jax
import jax.numpy as jnp
from jax.experimental import pallas as pl
from jax.experimental.pallas import tpu as pltpu


def _round_up(x, m):
    return ((x + m - 1) // m) * m


def _pad2(a, rows, cols):
    r, c = a.shape
    return jnp.pad(a, ((0, rows - r), (0, cols - c)))


def beta_vae_kernel(x_ref, eps_ref,
                    w1_ref, b1_ref,
                    wh_ref, bh_ref,
                    w3_ref, b3_ref,
                    w4_ref, b4_ref,
                    head_ref, recon_ref,
                    *, lp):
    # ---- encoder hidden (bf16 operands, f32 accumulation) ----
    h = jnp.dot(x_ref[...], w1_ref[...], preferred_element_type=jnp.float32)
    h = jnp.maximum(h + b1_ref[...], 0.0)                       # [TB, H1p] f32

    # ---- fused mu | log_var head (single lane-dense [TB, 2*LP] matmul) ----
    head = jnp.dot(h.astype(jnp.bfloat16), wh_ref[...],
                   preferred_element_type=jnp.float32) + bh_ref[...]
    head_ref[...] = head                                         # f32 output
    mu = head[:, :lp]                                            # [TB, LP]
    log_var = head[:, lp:]                                       # [TB, LP]

    # ---- reparameterization trick (exp goes to the EUP slot; keep in f32) ----
    z = mu + jnp.exp(0.5 * log_var) * eps_ref[...]               # [TB, LP]

    # ---- decoder ----
    d = jnp.dot(z.astype(jnp.bfloat16), w3_ref[...],
                preferred_element_type=jnp.float32)
    d = jnp.maximum(d + b3_ref[...], 0.0)                        # [TB, H1p]
    recon = jnp.dot(d.astype(jnp.bfloat16), w4_ref[...],
                    preferred_element_type=jnp.float32) + b4_ref[...]
    recon_ref[...] = recon                                       # [TB, Dp]


def beta_vae_forward(x_nchw, eps, params, *, block_b=128):
    """Fused BetaVAE forward. Returns the same dict as the torch module."""
    B, C, H, W = x_nchw.shape
    D = C * H * W
    (w1, b1, wmu, bmu, wlv, blv, w3, b3, w4, b4) = params
    H1 = w1.shape[1]
    L = wmu.shape[1]

    # Padded, MXU/lane-friendly sizes.
    Dp = _round_up(D, 128)
    H1p = _round_up(H1, 128)
    LP = _round_up(L, 128)
    TB = block_b
    Bp = _round_up(max(B, 1), TB)

    # Pad + cast weights once (bf16 MXU operands; biases stay f32).
    w1p = _pad2(w1, Dp, H1p).astype(jnp.bfloat16)
    b1p = _pad2(b1, 1, H1p)
    # Fused latent head: mu occupies lanes [0, LP), log_var lanes [LP, 2*LP).
    whp = jnp.concatenate(
        [_pad2(wmu, H1p, LP), _pad2(wlv, H1p, LP)], axis=1).astype(jnp.bfloat16)
    bhp = jnp.concatenate([_pad2(bmu, 1, LP), _pad2(blv, 1, LP)], axis=1)
    w3p = _pad2(w3, LP, H1p).astype(jnp.bfloat16)
    b3p = _pad2(b3, 1, H1p)
    w4p = _pad2(w4, H1p, Dp).astype(jnp.bfloat16)
    b4p = _pad2(b4, 1, Dp)

    x_flat = x_nchw.reshape(B, D)
    xp = _pad2(x_flat, Bp, Dp).astype(jnp.bfloat16)
    epsp = _pad2(eps, Bp, LP)                                    # f32

    grid = (Bp // TB,)

    # Advisory cost estimate (flops of the 4 matmuls, exp count, DMA bytes).
    flops = 2 * Bp * (Dp * H1p + H1p * 2 * LP + LP * H1p + H1p * Dp)
    transcendentals = Bp * LP
    bytes_accessed = (
        xp.size * 2 + epsp.size * 4
        + w1p.size * 2 + b1p.size * 4
        + whp.size * 2 + bhp.size * 4
        + w3p.size * 2 + b3p.size * 4
        + w4p.size * 2 + b4p.size * 4
        + Bp * 2 * LP * 4 + Bp * Dp * 4)

    def _wspec(shape):
        return pl.BlockSpec(shape, lambda i: (0, 0))             # weight resident

    head_pad, recon_pad = pl.pallas_call(
        functools.partial(beta_vae_kernel, lp=LP),
        out_shape=(
            jax.ShapeDtypeStruct((Bp, 2 * LP), jnp.float32),     # mu | log_var
            jax.ShapeDtypeStruct((Bp, Dp), jnp.float32),         # recon (flat)
        ),
        grid=grid,
        in_specs=[
            pl.BlockSpec((TB, Dp), lambda i: (i, 0)),            # x
            pl.BlockSpec((TB, LP), lambda i: (i, 0)),            # eps
            _wspec((Dp, H1p)), _wspec((1, H1p)),                 # w1, b1
            _wspec((H1p, 2 * LP)), _wspec((1, 2 * LP)),          # w_head, b_head
            _wspec((LP, H1p)), _wspec((1, H1p)),                 # w3, b3
            _wspec((H1p, Dp)), _wspec((1, Dp)),                  # w4, b4
        ],
        out_specs=(
            pl.BlockSpec((TB, 2 * LP), lambda i: (i, 0)),
            pl.BlockSpec((TB, Dp), lambda i: (i, 0)),
        ),
        compiler_params=pltpu.CompilerParams(
            dimension_semantics=("parallel",)),                  # megacore on v7x
        cost_estimate=pl.CostEstimate(
            flops=flops, transcendentals=transcendentals,
            bytes_accessed=bytes_accessed),
    )(xp, epsp, w1p, b1p, whp, bhp, w3p, b3p, w4p, b4p)

    mu = head_pad[:B, :L]
    log_var = head_pad[:B, LP:LP + L]
    recon_x = recon_pad[:B, :D].reshape(B, C, H, W)
    return {'x': x_nchw, 'mu': mu, 'log_var': log_var, 'recon_x': recon_x}


def init_params(key, in_dim, hidden_dim, latent_dim):
    ks = jax.random.split(key, 6)
    scale = 0.02
    w1 = scale * jax.random.normal(ks[0], (in_dim, hidden_dim), jnp.float32)
    b1 = jnp.zeros((1, hidden_dim), jnp.float32)
    wmu = scale * jax.random.normal(ks[1], (hidden_dim, latent_dim), jnp.float32)
    bmu = jnp.zeros((1, latent_dim), jnp.float32)
    wlv = scale * jax.random.normal(ks[2], (hidden_dim, latent_dim), jnp.float32)
    blv = jnp.zeros((1, latent_dim), jnp.float32)
    w3 = scale * jax.random.normal(ks[3], (latent_dim, hidden_dim), jnp.float32)
    b3 = jnp.zeros((1, hidden_dim), jnp.float32)
    w4 = scale * jax.random.normal(ks[4], (hidden_dim, in_dim), jnp.float32)
    b4 = jnp.zeros((1, in_dim), jnp.float32)
    return (w1, b1, wmu, bmu, wlv, blv, w3, b3, w4, b4)


if __name__ == "__main__":
    # Small shapes consistent with the module's forward (NCHW image input).
    B, C, H, W = 2, 4, 16, 16
    D = C * H * W          # 1024
    HIDDEN = 64
    LATENT = 8
    BETA = 4.0             # beta only affects loss_fn, not the forward pass.

    key = jax.random.PRNGKey(0)
    k_x, k_eps, k_p = jax.random.split(key, 3)

    x = jax.random.normal(k_x, (B, C, H, W), jnp.float32)
    # eps ~ N(0, 1): reparameterization noise (torch.randn_like(std)), drawn
    # deterministically outside the kernel.
    eps = jax.random.normal(k_eps, (B, LATENT), jnp.float32)
    params = init_params(k_p, D, HIDDEN, LATENT)

    out = beta_vae_forward(x, eps, params)
    jax.block_until_ready(out)

    assert out['mu'].shape == (B, LATENT)
    assert out['log_var'].shape == (B, LATENT)
    assert out['recon_x'].shape == (B, C, H, W)

    # Reference with identical bf16-operand / f32-accumulation math.
    (w1, b1, wmu, bmu, wlv, blv, w3, b3, w4, b4) = params
    bf = jnp.bfloat16
    xf = x.reshape(B, D).astype(bf)
    h_ref = jnp.maximum(
        jnp.dot(xf, w1.astype(bf), preferred_element_type=jnp.float32) + b1, 0.0)
    mu_ref = jnp.dot(h_ref.astype(bf), wmu.astype(bf),
                     preferred_element_type=jnp.float32) + bmu
    lv_ref = jnp.dot(h_ref.astype(bf), wlv.astype(bf),
                     preferred_element_type=jnp.float32) + blv
    z_ref = mu_ref + jnp.exp(0.5 * lv_ref) * eps
    d_ref = jnp.maximum(
        jnp.dot(z_ref.astype(bf), w3.astype(bf),
                preferred_element_type=jnp.float32) + b3, 0.0)
    recon_ref = (jnp.dot(d_ref.astype(bf), w4.astype(bf),
                         preferred_element_type=jnp.float32) + b4
                 ).reshape(B, C, H, W)

    assert jnp.allclose(out['mu'], mu_ref, atol=2e-3, rtol=2e-3)
    assert jnp.allclose(out['log_var'], lv_ref, atol=2e-3, rtol=2e-3)
    assert jnp.allclose(out['recon_x'], recon_ref, atol=2e-3, rtol=2e-3)

    print("KERNEL_OK")
</pallas_src>

<mosaic_0001>
module attributes {stable_mosaic.version = 11 : i64} {
  func.func @beta_vae_kernel(%arg0: i32, %arg1: memref<128x1024xbf16, #tpu.memory_space<vmem>>, %arg2: memref<128x128xf32, #tpu.memory_space<vmem>>, %arg3: memref<1024x128xbf16, #tpu.memory_space<vmem>>, %arg4: memref<1x128xf32, #tpu.memory_space<vmem>>, %arg5: memref<128x256xbf16, #tpu.memory_space<vmem>>, %arg6: memref<1x256xf32, #tpu.memory_space<vmem>>, %arg7: memref<128x128xbf16, #tpu.memory_space<vmem>>, %arg8: memref<1x128xf32, #tpu.memory_space<vmem>>, %arg9: memref<128x1024xbf16, #tpu.memory_space<vmem>>, %arg10: memref<1x1024xf32, #tpu.memory_space<vmem>>, %arg11: memref<128x256xf32, #tpu.memory_space<vmem>>, %arg12: memref<128x1024xf32, #tpu.memory_space<vmem>>) attributes {dimension_semantics = [#tpu.dimension_semantics<parallel>], iteration_bounds = array<i64: 1>, scalar_prefetch = 0 : i64, scratch_operands = 0 : i64, tpu.core_type = #tpu.core_type<tc>, window_params = [{transform_indices = @transform_0, window_bounds = array<i64: 128, 1024>}, {transform_indices = @transform_1, window_bounds = array<i64: 128, 128>}, {pipeline_mode = #tpu.pipeline_mode<synchronous>, transform_indices = @transform_2, window_bounds = array<i64: 1024, 128>}, {pipeline_mode = #tpu.pipeline_mode<synchronous>, transform_indices = @transform_3, window_bounds = array<i64: 1, 128>}, {pipeline_mode = #tpu.pipeline_mode<synchronous>, transform_indices = @transform_4, window_bounds = array<i64: 128, 256>}, {pipeline_mode = #tpu.pipeline_mode<synchronous>, transform_indices = @transform_5, window_bounds = array<i64: 1, 256>}, {pipeline_mode = #tpu.pipeline_mode<synchronous>, transform_indices = @transform_6, window_bounds = array<i64: 128, 128>}, {pipeline_mode = #tpu.pipeline_mode<synchronous>, transform_indices = @transform_7, window_bounds = array<i64: 1, 128>}, {pipeline_mode = #tpu.pipeline_mode<synchronous>, transform_indices = @transform_8, window_bounds = array<i64: 128, 1024>}, {pipeline_mode = #tpu.pipeline_mode<synchronous>, transform_indices = @transform_9, window_bounds = array<i64: 1, 1024>}, {transform_indices = @transform_10, window_bounds = array<i64: 128, 256>}, {transform_indices = @transform_11, window_bounds = array<i64: 128, 1024>}]} {
    %c0 = arith.constant 0 : index
    %c0_0 = arith.constant 0 : index
    %0 = vector.load %arg1[%c0, %c0_0] : memref<128x1024xbf16, #tpu.memory_space<vmem>>, vector<128x1024xbf16>
    %c0_1 = arith.constant 0 : index
    %c0_2 = arith.constant 0 : index
    %1 = vector.load %arg3[%c0_1, %c0_2] : memref<1024x128xbf16, #tpu.memory_space<vmem>>, vector<1024x128xbf16>
    %cst = arith.constant dense<0.000000e+00> : vector<128x128xf32>
    %2 = tpu.matmul %0, %1, %cst {dimension_numbers = #tpu.dot_dimension_numbers<[1], [0], [0], [1], [0, 0, 1, 1], [], []>} : vector<128x1024xbf16>, vector<1024x128xbf16>, vector<128x128xf32> -> vector<128x128xf32>
    %c0_3 = arith.constant 0 : index
    %c0_4 = arith.constant 0 : index
    %3 = vector.load %arg4[%c0_3, %c0_4] : memref<1x128xf32, #tpu.memory_space<vmem>>, vector<1x128xf32>
    %4 = vector.broadcast %3 : vector<1x128xf32> to vector<128x128xf32>
    %5 = arith.addf %2, %4 : vector<128x128xf32>
    %cst_5 = arith.constant 0.000000e+00 : f32
    %6 = vector.broadcast %cst_5 : f32 to vector<128x128xf32>
    %7 = arith.maximumf %5, %6 : vector<128x128xf32>
    %8 = arith.truncf %7 : vector<128x128xf32> to vector<128x128xbf16>
    %c0_6 = arith.constant 0 : index
    %c0_7 = arith.constant 0 : index
    %9 = vector.load %arg5[%c0_6, %c0_7] : memref<128x256xbf16, #tpu.memory_space<vmem>>, vector<128x256xbf16>
    %cst_8 = arith.constant dense<0.000000e+00> : vector<128x256xf32>
    %10 = tpu.matmul %8, %9, %cst_8 {dimension_numbers = #tpu.dot_dimension_numbers<[1], [0], [0], [1], [0, 0, 1, 1], [], []>} : vector<128x128xbf16>, vector<128x256xbf16>, vector<128x256xf32> -> vector<128x256xf32>
    %c0_9 = arith.constant 0 : index
    %c0_10 = arith.constant 0 : index
    %11 = vector.load %arg6[%c0_9, %c0_10] : memref<1x256xf32, #tpu.memory_space<vmem>>, vector<1x256xf32>
    %12 = vector.broadcast %11 : vector<1x256xf32> to vector<128x256xf32>
    %13 = arith.addf %10, %12 : vector<128x256xf32>
    %c0_11 = arith.constant 0 : index
    %c0_12 = arith.constant 0 : index
    %14 = vector.load %arg11[%c0_11, %c0_12] : memref<128x256xf32, #tpu.memory_space<vmem>>, vector<128x256xf32>
    tpu.vector_store %arg11[%c0_11, %c0_12], %13 {strides = array<i32>} : memref<128x256xf32, #tpu.memory_space<vmem>>, vector<128x256xf32>,
    %15 = vector.extract_strided_slice %13 {offsets = [0, 0], sizes = [128, 128], strides = [1, 1]} : vector<128x256xf32> to vector<128x128xf32>
    %16 = vector.extract_strided_slice %13 {offsets = [0, 128], sizes = [128, 128], strides = [1, 1]} : vector<128x256xf32> to vector<128x128xf32>
    %cst_13 = arith.constant 5.000000e-01 : f32
    %17 = vector.broadcast %cst_13 : f32 to vector<128x128xf32>
    %18 = arith.mulf %17, %16 : vector<128x128xf32>
    %19 = math.exp %18 : vector<128x128xf32>
    %c0_14 = arith.constant 0 : index
    %c0_15 = arith.constant 0 : index
    %20 = vector.load %arg2[%c0_14, %c0_15] : memref<128x128xf32, #tpu.memory_space<vmem>>, vector<128x128xf32>
    %21 = arith.mulf %19, %20 : vector<128x128xf32>
    %22 = arith.addf %15, %21 : vector<128x128xf32>
    %23 = arith.truncf %22 : vector<128x128xf32> to vector<128x128xbf16>
    %c0_16 = arith.constant 0 : index
    %c0_17 = arith.constant 0 : index
    %24 = vector.load %arg7[%c0_16, %c0_17] : memref<128x128xbf16, #tpu.memory_space<vmem>>, vector<128x128xbf16>
    %cst_18 = arith.constant dense<0.000000e+00> : vector<128x128xf32>
    %25 = tpu.matmul %23, %24, %cst_18 {dimension_numbers = #tpu.dot_dimension_numbers<[1], [0], [0], [1], [0, 0, 1, 1], [], []>} : vector<128x128xbf16>, vector<128x128xbf16>, vector<128x128xf32> -> vector<128x128xf32>
    %c0_19 = arith.constant 0 : index
    %c0_20 = arith.constant 0 : index
    %26 = vector.load %arg8[%c0_19, %c0_20] : memref<1x128xf32, #tpu.memory_space<vmem>>, vector<1x128xf32>
    %27 = vector.broadcast %26 : vector<1x128xf32> to vector<128x128xf32>
    %28 = arith.addf %25, %27 : vector<128x128xf32>
    %cst_21 = arith.constant 0.000000e+00 : f32
    %29 = vector.broadcast %cst_21 : f32 to vector<128x128xf32>
    %30 = arith.maximumf %28, %29 : vector<128x128xf32>
    %31 = arith.truncf %30 : vector<128x128xf32> to vector<128x128xbf16>
    %c0_22 = arith.constant 0 : index
    %c0_23 = arith.constant 0 : index
    %32 = vector.load %arg9[%c0_22, %c0_23] : memref<128x1024xbf16, #tpu.memory_space<vmem>>, vector<128x1024xbf16>
    %cst_24 = arith.constant dense<0.000000e+00> : vector<128x1024xf32>
    %33 = tpu.matmul %31, %32, %cst_24 {dimension_numbers = #tpu.dot_dimension_numbers<[1], [0], [0], [1], [0, 0, 1, 1], [], []>} : vector<128x128xbf16>, vector<128x1024xbf16>, vector<128x1024xf32> -> vector<128x1024xf32>
    %c0_25 = arith.constant 0 : index
    %c0_26 = arith.constant 0 : index
    %34 = vector.load %arg10[%c0_25, %c0_26] : memref<1x1024xf32, #tpu.memory_space<vmem>>, vector<1x1024xf32>
    %35 = vector.broadcast %34 : vector<1x1024xf32> to vector<128x1024xf32>
    %36 = arith.addf %33, %35 : vector<128x1024xf32>
    %c0_27 = arith.constant 0 : index
    %c0_28 = arith.constant 0 : index
    %37 = vector.load %arg12[%c0_27, %c0_28] : memref<128x1024xf32, #tpu.memory_space<vmem>>, vector<128x1024xf32>
    tpu.vector_store %arg12[%c0_27, %c0_28], %36 {strides = array<i32>} : memref<128x1024xf32, #tpu.memory_space<vmem>>, vector<128x1024xf32>,
    return
  }
  func.func @transform_0(%arg0: i32) -> (i32, i32) {
    %c0_i32 = arith.constant 0 : i32
    %c0_i32_0 = arith.constant 0 : i32
    return %arg0, %c0_i32 : i32, i32
  }
  func.func @transform_1(%arg0: i32) -> (i32, i32) {
    %c0_i32 = arith.constant 0 : i32
    %c0_i32_0 = arith.constant 0 : i32
    return %arg0, %c0_i32 : i32, i32
  }
  func.func @transform_2(%arg0: i32) -> (i32, i32) {
    %c0_i32 = arith.constant 0 : i32
    %c0_i32_0 = arith.constant 0 : i32
    %c0_i32_1 = arith.constant 0 : i32
    return %c0_i32, %c0_i32_0 : i32, i32
  }
  func.func @transform_3(%arg0: i32) -> (i32, i32) {
    %c0_i32 = arith.constant 0 : i32
    %c0_i32_0 = arith.constant 0 : i32
    %c0_i32_1 = arith.constant 0 : i32
    return %c0_i32, %c0_i32_0 : i32, i32
  }
  func.func @transform_4(%arg0: i32) -> (i32, i32) {
    %c0_i32 = arith.constant 0 : i32
    %c0_i32_0 = arith.constant 0 : i32
    %c0_i32_1 = arith.constant 0 : i32
    return %c0_i32, %c0_i32_0 : i32, i32
  }
  func.func @transform_5(%arg0: i32) -> (i32, i32) {
    %c0_i32 = arith.constant 0 : i32
    %c0_i32_0 = arith.constant 0 : i32
    %c0_i32_1 = arith.constant 0 : i32
    return %c0_i32, %c0_i32_0 : i32, i32
  }
  func.func @transform_6(%arg0: i32) -> (i32, i32) {
    %c0_i32 = arith.constant 0 : i32
    %c0_i32_0 = arith.constant 0 : i32
    %c0_i32_1 = arith.constant 0 : i32
    return %c0_i32, %c0_i32_0 : i32, i32
  }
  func.func @transform_7(%arg0: i32) -> (i32, i32) {
    %c0_i32 = arith.constant 0 : i32
    %c0_i32_0 = arith.constant 0 : i32
    %c0_i32_1 = arith.constant 0 : i32
    return %c0_i32, %c0_i32_0 : i32, i32
  }
  func.func @transform_8(%arg0: i32) -> (i32, i32) {
    %c0_i32 = arith.constant 0 : i32
    %c0_i32_0 = arith.constant 0 : i32
    %c0_i32_1 = arith.constant 0 : i32
    return %c0_i32, %c0_i32_0 : i32, i32
  }
  func.func @transform_9(%arg0: i32) -> (i32, i32) {
    %c0_i32 = arith.constant 0 : i32
    %c0_i32_0 = arith.constant 0 : i32
    %c0_i32_1 = arith.constant 0 : i32
    return %c0_i32, %c0_i32_0 : i32, i32
  }
  func.func @transform_10(%arg0: i32) -> (i32, i32) {
    %c0_i32 = arith.constant 0 : i32
    %c0_i32_0 = arith.constant 0 : i32
    return %arg0, %c0_i32 : i32, i32
  }
  func.func @transform_11(%arg0: i32) -> (i32, i32) {
    %c0_i32 = arith.constant 0 : i32
    %c0_i32_0 = arith.constant 0 : i32
    return %arg0, %c0_i32 : i32, i32
  }
}

</mosaic_0001>

<llo_original>
// kernel: tpu_custom_call.1
$region0: #{tpu_custom_call.1}
  #allocation0 [shape = 'u32[]', space=smem, size = 0x4, offset = 0x4, fixed_abs, tag = 'smem constant byte address 0x4 - core index']
  #allocation1 [shape = 'u32[144,128]{1,0:T(1,128)}', space=vmem, size = 0x12000, scoped, tag = 'internal scratch']
  %s0 = inlined_call_operand.hbm [shape: bf16[128,1024], index: 0, kind: input, shape index: {}]
  %s1 = inlined_call_operand.hbm [shape: f32[128,128], index: 1, kind: input, shape index: {}]
  %s2 = inlined_call_operand.hbm [shape: bf16[1024,128], index: 2, kind: input, shape index: {}]
  %s3 = inlined_call_operand.vmem [shape: f32[1,128], index: 3, kind: input, shape index: {}]
  %s4 = inlined_call_operand.hbm [shape: bf16[128,256], index: 4, kind: input, shape index: {}]
  %s5 = inlined_call_operand.vmem [shape: f32[1,256], index: 5, kind: input, shape index: {}]
  %s6 = inlined_call_operand.hbm [shape: bf16[128,128], index: 6, kind: input, shape index: {}]
  %s7 = inlined_call_operand.vmem [shape: f32[1,128], index: 7, kind: input, shape index: {}]
  %s8 = inlined_call_operand.hbm [shape: bf16[128,1024], index: 8, kind: input, shape index: {}]
  %s9 = inlined_call_operand.vmem [shape: f32[1,1024], index: 9, kind: input, shape index: {}]
  %s10 = inlined_call_operand.hbm [shape: f32[128,256], index: 10, kind: output, shape index: {0}]
  %s11 = inlined_call_operand.hbm [shape: f32[128,1024], index: 11, kind: output, shape index: {1}]
  %12 = xla_tuple %s10, %s11
  %s13 = sld [smem:[#allocation0]]
  $region82: #{tpu_custom_call.1} parent=0
    _
  %s15 = ssub.s32 1, %s13
  %s16 = scalar_select 0, %s15, %s13
  $region1: #{tpu_custom_call.1} parent=0
    #allocation2 [shape = 'u8[262144]{0}', space=vmem, size = 0x40000, scoped, tag = 'input window, operand 0, single buffered']
    #allocation3 [shape = 's32[1]{0}', space=sflag, size = 0x4, scoped, tag = 'scoped memory for tpu_custom_call.1']
    #allocation4 [shape = 's32[1]{0}', space=sflag, size = 0x4, scoped, tag = 'scoped memory for tpu_custom_call.1']
    #allocation5 [shape = 'u8[65536]{0}', space=vmem, size = 0x10000, scoped, tag = 'input window, operand 1, single buffered']
    #allocation6 [shape = 's32[1]{0}', space=sflag, size = 0x4, scoped, tag = 'scoped memory for tpu_custom_call.1']
    #allocation7 [shape = 'u8[262144]{0}', space=vmem, size = 0x40000, scoped, tag = 'input window, operand 2, single buffered']
    #allocation8 [shape = 'u8[65536]{0}', space=vmem, size = 0x10000, scoped, tag = 'input window, operand 4, single buffered']
    #allocation9 [shape = 's32[1]{0}', space=sflag, size = 0x4, scoped, tag = 'scoped memory for tpu_custom_call.1']
    #allocation10 [shape = 'u8[32768]{0}', space=vmem, size = 0x8000, scoped, tag = 'input window, operand 6, single buffered']
    #allocation11 [shape = 'u8[262144]{0}', space=vmem, size = 0x40000, scoped, tag = 'input window, operand 8, single buffered']
    #allocation12 [shape = 's32[1]{0}', space=sflag, size = 0x4, scoped, tag = 'scoped memory for tpu_custom_call.1']
    #allocation13 [shape = 'u8[131072]{0}', space=vmem, size = 0x20000, scoped, tag = 'output window, operand 0, single buffered']
    #allocation14 [shape = 'u8[524288]{0}', space=vmem, size = 0x80000, scoped, tag = 'output window, operand 1, single buffered']
    #allocation15 [shape = 's32[1]{0}', space=sflag, size = 0x4, scoped, tag = 'scoped memory for tpu_custom_call.1']
    %17 = vsyncpa [#allocation3], 0
    %18 = vsyncpa [#allocation6], 0
    %19 = vsyncpa [#allocation9], 0
    %20 = vsyncpa [#allocation12], 0
    %21 = vsyncpa [#allocation4], 0
    %22 = vsyncpa [#allocation15], 0
    // Predicated region
    $region2: #{tpu_custom_call.1} parent=1 // pred_check
      _
    $region3: #{tpu_custom_call.1} parent=1 // pred_check_branch
      %24 = sbr.rel (0) target = $region5
    $region4: #{tpu_custom_call.1} parent=1 // pred_region
      %s26 = ssub.s32 8192, 8192
      %27 = vsyncadd [#allocation3], %s26
      %s28 = sshll.u32 [#allocation2], 4
      %s29 = int_to_ptr.vmem [resolvable:$true] %s28
      %34 = dma.hbm_to_vmem [thread:$0]  %s0, 8192, %s29, [#allocation3], 512, 512, 32
    $region5: #{tpu_custom_call.1} parent=1 // pred_fallthru
      _
    // Predicated region
    $region6: #{tpu_custom_call.1} parent=1 // pred_check
      _
    $region7: #{tpu_custom_call.1} parent=1 // pred_check_branch
      %36 = sbr.rel (0) target = $region9
    $region8: #{tpu_custom_call.1} parent=1 // pred_region
      %s38 = ssub.s32 2048, 2048
      %39 = vsyncadd [#allocation6], %s38
      %s40 = sshll.u32 [#allocation5], 4
      %s41 = int_to_ptr.vmem [resolvable:$true] %s40
      %46 = dma.hbm_to_vmem [thread:$0]  %s1, 2048, %s41, [#allocation6], 128, 128, 8
    $region9: #{tpu_custom_call.1} parent=1 // pred_fallthru
      _
    // Predicated region
    $region10: #{tpu_custom_call.1} parent=1 // pred_check
      _
    $region11: #{tpu_custom_call.1} parent=1 // pred_check_branch
      %48 = sbr.rel (0) target = $region13
    $region12: #{tpu_custom_call.1} parent=1 // pred_region
      %s50 = ssub.s32 8192, 8192
      %51 = vsyncadd [#allocation6], %s50
      %s52 = sshll.u32 [#allocation7], 4
      %s53 = int_to_ptr.vmem [resolvable:$true] %s52
      %58 = dma.hbm_to_vmem [thread:$0]  %s2, 8192, %s53, [#allocation6], 64, 64, 4
    $region13: #{tpu_custom_call.1} parent=1 // pred_fallthru
      _
    // Predicated region
    $region14: #{tpu_custom_call.1} parent=1 // pred_check
      _
    $region15: #{tpu_custom_call.1} parent=1 // pred_check_branch
      %60 = sbr.rel (0) target = $region17
    $region16: #{tpu_custom_call.1} parent=1 // pred_region
      _
    $region17: #{tpu_custom_call.1} parent=1 // pred_fallthru
      _
    // Predicated region
    $region18: #{tpu_custom_call.1} parent=1 // pred_check
      _
    $region19: #{tpu_custom_call.1} parent=1 // pred_check_branch
      %62 = sbr.rel (0) target = $region21
    $region20: #{tpu_custom_call.1} parent=1 // pred_region
      %s64 = ssub.s32 2048, 2048
      %65 = vsyncadd [#allocation9], %s64
      %s66 = sshll.u32 [#allocation8], 4
      %s67 = int_to_ptr.vmem [resolvable:$true] %s66
      %72 = dma.hbm_to_vmem [thread:$0]  %s4, 2048, %s67, [#allocation9], 128, 128, 8
    $region21: #{tpu_custom_call.1} parent=1 // pred_fallthru
      _
    // Predicated region
    $region22: #{tpu_custom_call.1} parent=1 // pred_check
      _
    $region23: #{tpu_custom_call.1} parent=1 // pred_check_branch
      %74 = sbr.rel (0) target = $region25
    $region24: #{tpu_custom_call.1} parent=1 // pred_region
      _
    $region25: #{tpu_custom_call.1} parent=1 // pred_fallthru
      _
    // Predicated region
    $region26: #{tpu_custom_call.1} parent=1 // pred_check
      _
    $region27: #{tpu_custom_call.1} parent=1 // pred_check_branch
      %76 = sbr.rel (0) target = $region29
    $region28: #{tpu_custom_call.1} parent=1 // pred_region
      %s78 = ssub.s32 1024, 1024
      %79 = vsyncadd [#allocation9], %s78
      %s80 = sshll.u32 [#allocation10], 4
      %s81 = int_to_ptr.vmem [resolvable:$true] %s80
      %86 = dma.hbm_to_vmem [thread:$0]  %s6, 1024, %s81, [#allocation9], 64, 64, 4
    $region29: #{tpu_custom_call.1} parent=1 // pred_fallthru
      _
    // Predicated region
    $region30: #{tpu_custom_call.1} parent=1 // pred_check
      _
    $region31: #{tpu_custom_call.1} parent=1 // pred_check_branch
      %88 = sbr.rel (0) target = $region33
    $region32: #{tpu_custom_call.1} parent=1 // pred_region
      _
    $region33: #{tpu_custom_call.1} parent=1 // pred_fallthru
      _
    // Predicated region
    $region34: #{tpu_custom_call.1} parent=1 // pred_check
      _
    $region35: #{tpu_custom_call.1} parent=1 // pred_check_branch
      %90 = sbr.rel (0) target = $region37
    $region36: #{tpu_custom_call.1} parent=1 // pred_region
      %s92 = ssub.s32 8192, 8192
      %93 = vsyncadd [#allocation12], %s92
      %s94 = sshll.u32 [#allocation11], 4
      %s95 = int_to_ptr.vmem [resolvable:$true] %s94
      %100 = dma.hbm_to_vmem [thread:$0]  %s8, 8192, %s95, [#allocation12], 512, 512, 32
    $region37: #{tpu_custom_call.1} parent=1 // pred_fallthru
      _
    // Predicated region
    $region38: #{tpu_custom_call.1} parent=1 // pred_check
      _
    $region39: #{tpu_custom_call.1} parent=1 // pred_check_branch
      %102 = sbr.rel (0) target = $region41
    $region40: #{tpu_custom_call.1} parent=1 // pred_region
      _
    $region41: #{tpu_custom_call.1} parent=1 // pred_fallthru
      _
    // Predicated region
    $region42: #{tpu_custom_call.1} parent=1 // pred_check
      _
    $region43: #{tpu_custom_call.1} parent=1 // pred_check_branch
      %104 = sbr.rel (0) target = $region45
    $region44: #{tpu_custom_call.1} parent=1 // pred_region
      %105 = dma.done [#allocation3], 8192
    $region45: #{tpu_custom_call.1} parent=1 // pred_fallthru
      _
    // Predicated region
    $region46: #{tpu_custom_call.1} parent=1 // pred_check
      _
    $region47: #{tpu_custom_call.1} parent=1 // pred_check_branch
      %107 = sbr.rel (0) target = $region49
    $region48: #{tpu_custom_call.1} parent=1 // pred_region
      %108 = dma.done [#allocation6], 2048
    $region49: #{tpu_custom_call.1} parent=1 // pred_fallthru
      _
    // Predicated region
    $region50: #{tpu_custom_call.1} parent=1 // pred_check
      _
    $region51: #{tpu_custom_call.1} parent=1 // pred_check_branch
      %110 = sbr.rel (0) target = $region53
    $region52: #{tpu_custom_call.1} parent=1 // pred_region
      %111 = dma.done [#allocation6], 8192
    $region53: #{tpu_custom_call.1} parent=1 // pred_fallthru
      _
    // Predicated region
    $region54: #{tpu_custom_call.1} parent=1 // pred_check
      _
    $region55: #{tpu_custom_call.1} parent=1 // pred_check_branch
      %113 = sbr.rel (0) target = $region57
    $region56: #{tpu_custom_call.1} parent=1 // pred_region
      %114 = dma.done [#allocation9], 2048
    $region57: #{tpu_custom_call.1} parent=1 // pred_fallthru
      _
    // Predicated region
    $region58: #{tpu_custom_call.1} parent=1 // pred_check
      _
    $region59: #{tpu_custom_call.1} parent=1 // pred_check_branch
      %116 = sbr.rel (0) target = $region61
    $region60: #{tpu_custom_call.1} parent=1 // pred_region
      %117 = dma.done [#allocation9], 1024
    $region61: #{tpu_custom_call.1} parent=1 // pred_fallthru
      _
    // Predicated region
    $region62: #{tpu_custom_call.1} parent=1 // pred_check
      _
    $region63: #{tpu_custom_call.1} parent=1 // pred_check_branch
      %119 = sbr.rel (0) target = $region65
    $region64: #{tpu_custom_call.1} parent=1 // pred_region
      %120 = dma.done [#allocation12], 8192
    $region65: #{tpu_custom_call.1} parent=1 // pred_fallthru
      _
    %v122 = vld [vmem:[#allocation2] sm:$0xff]
    %v123 = vld [vmem:[#allocation2 + $0x8] sm:$0xff]
    %v124 = vld [vmem:[#allocation2 + $0x10] sm:$0xff]
    %v125 = vld [vmem:[#allocation2 + $0x18] sm:$0xff]
    %v126 = vld [vmem:[#allocation2 + $0x20] sm:$0xff]
    %v127 = vld [vmem:[#allocation2 + $0x28] sm:$0xff]
    %v128 = vld [vmem:[#allocation2 + $0x30] sm:$0xff]
    %v129 = vld [vmem:[#allocation2 + $0x38] sm:$0xff]
    %v130 = vld [vmem:[#allocation2 + $0x40] sm:$0xff]
    %v131 = vld [vmem:[#allocation2 + $0x48] sm:$0xff]
    %v132 = vld [vmem:[#allocation2 + $0x50] sm:$0xff]
    %v133 = vld [vmem:[#allocation2 + $0x58] sm:$0xff]
    %v134 = vld [vmem:[#allocation2 + $0x60] sm:$0xff]
    %v135 = vld [vmem:[#allocation2 + $0x68] sm:$0xff]
    %v136 = vld [vmem:[#allocation2 + $0x70] sm:$0xff]
    %v137 = vld [vmem:[#allocation2 + $0x78] sm:$0xff]
    %v138 = vld [vmem:[#allocation2 + $0x80] sm:$0xff]
    %v139 = vld [vmem:[#allocation2 + $0x88] sm:$0xff]
    %v140 = vld [vmem:[#allocation2 + $0x90] sm:$0xff]
    %v141 = vld [vmem:[#allocation2 + $0x98] sm:$0xff]
    %v142 = vld [vmem:[#allocation2 + $0xa0] sm:$0xff]
    %v143 = vld [vmem:[#allocation2 + $0xa8] sm:$0xff]
    %v144 = vld [vmem:[#allocation2 + $0xb0] sm:$0xff]
    %v145 = vld [vmem:[#allocation2 + $0xb8] sm:$0xff]
    %v146 = vld [vmem:[#allocation2 + $0xc0] sm:$0xff]
    %v147 = vld [vmem:[#allocation2 + $0xc8] sm:$0xff]
    %v148 = vld [vmem:[#allocation2 + $0xd0] sm:$0xff]
    %v149 = vld [vmem:[#allocation2 + $0xd8] sm:$0xff]
    %v150 = vld [vmem:[#allocation2 + $0xe0] sm:$0xff]
    %v151 = vld [vmem:[#allocation2 + $0xe8] sm:$0xff]
    %v152 = vld [vmem:[#allocation2 + $0xf0] sm:$0xff]
    %v153 = vld [vmem:[#allocation2 + $0xf8] sm:$0xff]
    %v154 = vld [vmem:[#allocation2 + $0x100] sm:$0xff]
    %v155 = vld [vmem:[#allocation2 + $0x108] sm:$0xff]
    %v156 = vld [vmem:[#allocation2 + $0x110] sm:$0xff]
    %v157 = vld [vmem:[#allocation2 + $0x118] sm:$0xff]
    %v158 = vld [vmem:[#allocation2 + $0x120] sm:$0xff]
    %v159 = vld [vmem:[#allocation2 + $0x128] sm:$0xff]
    %v160 = vld [vmem:[#allocation2 + $0x130] sm:$0xff]
    %v161 = vld [vmem:[#allocation2 + $0x138] sm:$0xff]
    %v162 = vld [vmem:[#allocation2 + $0x140] sm:$0xff]
    %v163 = vld [vmem:[#allocation2 + $0x148] sm:$0xff]
    %v164 = vld [vmem:[#allocation2 + $0x150] sm:$0xff]
    %v165 = vld [vmem:[#allocation2 + $0x158] sm:$0xff]
    %v166 = vld [vmem:[#allocation2 + $0x160] sm:$0xff]
    %v167 = vld [vmem:[#allocation2 + $0x168] sm:$0xff]
    %v168 = vld [vmem:[#allocation2 + $0x170] sm:$0xff]
    %v169 = vld [vmem:[#allocation2 + $0x178] sm:$0xff]
    %v170 = vld [vmem:[#allocation2 + $0x180] sm:$0xff]
    %v171 = vld [vmem:[#allocation2 + $0x188] sm:$0xff]
    %v172 = vld [vmem:[#allocation2 + $0x190] sm:$0xff]
    %v173 = vld [vmem:[#allocation2 + $0x198] sm:$0xff]
    %v174 = vld [vmem:[#allocation2 + $0x1a0] sm:$0xff]
    %v175 = vld [vmem:[#allocation2 + $0x1a8] sm:$0xff]
    %v176 = vld [vmem:[#allocation2 + $0x1b0] sm:$0xff]
    %v177 = vld [vmem:[#allocation2 + $0x1b8] sm:$0xff]
    %v178 = vld [vmem:[#allocation2 + $0x1c0] sm:$0xff]
    %v179 = vld [vmem:[#allocation2 + $0x1c8] sm:$0xff]
    %v180 = vld [vmem:[#allocation2 + $0x1d0] sm:$0xff]
    %v181 = vld [vmem:[#allocation2 + $0x1d8] sm:$0xff]
    %v182 = vld [vmem:[#allocation2 + $0x1e0] sm:$0xff]
    %v183 = vld [vmem:[#allocation2 + $0x1e8] sm:$0xff]
    %v184 = vld [vmem:[#allocation2 + $0x1f0] sm:$0xff]
    %v185 = vld [vmem:[#allocation2 + $0x1f8] sm:$0xff]
    %v186 = vld [vmem:[#allocation7] sm:$0xf]
    %v187 = vld [vmem:[#allocation7 + $0x4] sm:$0xf]
    %v188 = vld [vmem:[#allocation7 + $0x8] sm:$0xf]
    %v189 = vld [vmem:[#allocation7 + $0xc] sm:$0xf]
    %v190 = vld [vmem:[#allocation7 + $0x10] sm:$0xf]
    %v191 = vld [vmem:[#allocation7 + $0x14] sm:$0xf]
    %v192 = vld [vmem:[#allocation7 + $0x18] sm:$0xf]
    %v193 = vld [vmem:[#allocation7 + $0x1c] sm:$0xf]
    %v194 = vld [vmem:[#allocation7 + $0x20] sm:$0xf]
    %v195 = vld [vmem:[#allocation7 + $0x24] sm:$0xf]
    %v196 = vld [vmem:[#allocation7 + $0x28] sm:$0xf]
    %v197 = vld [vmem:[#allocation7 + $0x2c] sm:$0xf]
    %v198 = vld [vmem:[#allocation7 + $0x30] sm:$0xf]
    %v199 = vld [vmem:[#allocation7 + $0x34] sm:$0xf]
    %v200 = vld [vmem:[#allocation7 + $0x38] sm:$0xf]
    %v201 = vld [vmem:[#allocation7 + $0x3c] sm:$0xf]
    %v202 = vld [vmem:[#allocation7 + $0x40] sm:$0xf]
    %v203 = vld [vmem:[#allocation7 + $0x44] sm:$0xf]
    %v204 = vld [vmem:[#allocation7 + $0x48] sm:$0xf]
    %v205 = vld [vmem:[#allocation7 + $0x4c] sm:$0xf]
    %v206 = vld [vmem:[#allocation7 + $0x50] sm:$0xf]
    %v207 = vld [vmem:[#allocation7 + $0x54] sm:$0xf]
    %v208 = vld [vmem:[#allocation7 + $0x58] sm:$0xf]
    %v209 = vld [vmem:[#allocation7 + $0x5c] sm:$0xf]
    %v210 = vld [vmem:[#allocation7 + $0x60] sm:$0xf]
    %v211 = vld [vmem:[#allocation7 + $0x64] sm:$0xf]
    %v212 = vld [vmem:[#allocation7 + $0x68] sm:$0xf]
    %v213 = vld [vmem:[#allocation7 + $0x6c] sm:$0xf]
    %v214 = vld [vmem:[#allocation7 + $0x70] sm:$0xf]
    %v215 = vld [vmem:[#allocation7 + $0x74] sm:$0xf]
    %v216 = vld [vmem:[#allocation7 + $0x78] sm:$0xf]
    %v217 = vld [vmem:[#allocation7 + $0x7c] sm:$0xf]
    %v218 = vld [vmem:[#allocation7 + $0x80] sm:$0xf]
    %v219 = vld [vmem:[#allocation7 + $0x84] sm:$0xf]
    %v220 = vld [vmem:[#allocation7 + $0x88] sm:$0xf]
    %v221 = vld [vmem:[#allocation7 + $0x8c] sm:$0xf]
    %v222 = vld [vmem:[#allocation7 + $0x90] sm:$0xf]
    %v223 = vld [vmem:[#allocation7 + $0x94] sm:$0xf]
    %v224 = vld [vmem:[#allocation7 + $0x98] sm:$0xf]
    %v225 = vld [vmem:[#allocation7 + $0x9c] sm:$0xf]
    %v226 = vld [vmem:[#allocation7 + $0xa0] sm:$0xf]
    %v227 = vld [vmem:[#allocation7 + $0xa4] sm:$0xf]
    %v228 = vld [vmem:[#allocation7 + $0xa8] sm:$0xf]
    %v229 = vld [vmem:[#allocation7 + $0xac] sm:$0xf]
    %v230 = vld [vmem:[#allocation7 + $0xb0] sm:$0xf]
    %v231 = vld [vmem:[#allocation7 + $0xb4] sm:$0xf]
    %v232 = vld [vmem:[#allocation7 + $0xb8] sm:$0xf]
    %v233 = vld [vmem:[#allocation7 + $0xbc] sm:$0xf]
    %v234 = vld [vmem:[#allocation7 + $0xc0] sm:$0xf]
    %v235 = vld [vmem:[#allocation7 + $0xc4] sm:$0xf]
    %v236 = vld [vmem:[#allocation7 + $0xc8] sm:$0xf]
    %v237 = vld [vmem:[#allocation7 + $0xcc] sm:$0xf]
    %v238 = vld [vmem:[#allocation7 + $0xd0] sm:$0xf]
    %v239 = vld [vmem:[#allocation7 + $0xd4] sm:$0xf]
    %v240 = vld [vmem:[#allocation7 + $0xd8] sm:$0xf]
    %v241 = vld [vmem:[#allocation7 + $0xdc] sm:$0xf]
    %v242 = vld [vmem:[#allocation7 + $0xe0] sm:$0xf]
    %v243 = vld [vmem:[#allocation7 + $0xe4] sm:$0xf]
    %v244 = vld [vmem:[#allocation7 + $0xe8] sm:$0xf]
    %v245 = vld [vmem:[#allocation7 + $0xec] sm:$0xf]
    %v246 = vld [vmem:[#allocation7 + $0xf0] sm:$0xf]
    %v247 = vld [vmem:[#allocation7 + $0xf4] sm:$0xf]
    %v248 = vld [vmem:[#allocation7 + $0xf8] sm:$0xf]
    %v249 = vld [vmem:[#allocation7 + $0xfc] sm:$0xf]
    %v250 = vld [vmem:[#allocation7 + $0x100] sm:$0xf]
    %v251 = vld [vmem:[#allocation7 + $0x104] sm:$0xf]
    %v252 = vld [vmem:[#allocation7 + $0x108] sm:$0xf]
    %v253 = vld [vmem:[#allocation7 + $0x10c] sm:$0xf]
    %v254 = vld [vmem:[#allocation7 + $0x110] sm:$0xf]
    %v255 = vld [vmem:[#allocation7 + $0x114] sm:$0xf]
    %v256 = vld [vmem:[#allocation7 + $0x118] sm:$0xf]
    %v257 = vld [vmem:[#allocation7 + $0x11c] sm:$0xf]
    %v258 = vld [vmem:[#allocation7 + $0x120] sm:$0xf]
    %v259 = vld [vmem:[#allocation7 + $0x124] sm:$0xf]
    %v260 = vld [vmem:[#allocation7 + $0x128] sm:$0xf]
    %v261 = vld [vmem:[#allocation7 + $0x12c] sm:$0xf]
    %v262 = vld [vmem:[#allocation7 + $0x130] sm:$0xf]
    %v263 = vld [vmem:[#allocation7 + $0x134] sm:$0xf]
    %v264 = vld [vmem:[#allocation7 + $0x138] sm:$0xf]
    %v265 = vld [vmem:[#allocation7 + $0x13c] sm:$0xf]
    %v266 = vld [vmem:[#allocation7 + $0x140] sm:$0xf]
    %v267 = vld [vmem:[#allocation7 + $0x144] sm:$0xf]
    %v268 = vld [vmem:[#allocation7 + $0x148] sm:$0xf]
    %v269 = vld [vmem:[#allocation7 + $0x14c] sm:$0xf]
    %v270 = vld [vmem:[#allocation7 + $0x150] sm:$0xf]
    %v271 = vld [vmem:[#allocation7 + $0x154] sm:$0xf]
    %v272 = vld [vmem:[#allocation7 + $0x158] sm:$0xf]
    %v273 = vld [vmem:[#allocation7 + $0x15c] sm:$0xf]
    %v274 = vld [vmem:[#allocation7 + $0x160] sm:$0xf]
    %v275 = vld [vmem:[#allocation7 + $0x164] sm:$0xf]
    %v276 = vld [vmem:[#allocation7 + $0x168] sm:$0xf]
    %v277 = vld [vmem:[#allocation7 + $0x16c] sm:$0xf]
    %v278 = vld [vmem:[#allocation7 + $0x170] sm:$0xf]
    %v279 = vld [vmem:[#allocation7 + $0x174] sm:$0xf]
    %v280 = vld [vmem:[#allocation7 + $0x178] sm:$0xf]
    %v281 = vld [vmem:[#allocation7 + $0x17c] sm:$0xf]
    %v282 = vld [vmem:[#allocation7 + $0x180] sm:$0xf]
    %v283 = vld [vmem:[#allocation7 + $0x184] sm:$0xf]
    %v284 = vld [vmem:[#allocation7 + $0x188] sm:$0xf]
    %v285 = vld [vmem:[#allocation7 + $0x18c] sm:$0xf]
    %v286 = vld [vmem:[#allocation7 + $0x190] sm:$0xf]
    %v287 = vld [vmem:[#allocation7 + $0x194] sm:$0xf]
    %v288 = vld [vmem:[#allocation7 + $0x198] sm:$0xf]
    %v289 = vld [vmem:[#allocation7 + $0x19c] sm:$0xf]
    %v290 = vld [vmem:[#allocation7 + $0x1a0] sm:$0xf]
    %v291 = vld [vmem:[#allocation7 + $0x1a4] sm:$0xf]
    %v292 = vld [vmem:[#allocation7 + $0x1a8] sm:$0xf]
    %v293 = vld [vmem:[#allocation7 + $0x1ac] sm:$0xf]
    %v294 = vld [vmem:[#allocation7 + $0x1b0] sm:$0xf]
    %v295 = vld [vmem:[#allocation7 + $0x1b4] sm:$0xf]
    %v296 = vld [vmem:[#allocation7 + $0x1b8] sm:$0xf]
    %v297 = vld [vmem:[#allocation7 + $0x1bc] sm:$0xf]
    %v298 = vld [vmem:[#allocation7 + $0x1c0] sm:$0xf]
    %v299 = vld [vmem:[#allocation7 + $0x1c4] sm:$0xf]
    %v300 = vld [vmem:[#allocation7 + $0x1c8] sm:$0xf]
    %v301 = vld [vmem:[#allocation7 + $0x1cc] sm:$0xf]
    %v302 = vld [vmem:[#allocation7 + $0x1d0] sm:$0xf]
    %v303 = vld [vmem:[#allocation7 + $0x1d4] sm:$0xf]
    %v304 = vld [vmem:[#allocation7 + $0x1d8] sm:$0xf]
    %v305 = vld [vmem:[#allocation7 + $0x1dc] sm:$0xf]
    %v306 = vld [vmem:[#allocation7 + $0x1e0] sm:$0xf]
    %v307 = vld [vmem:[#allocation7 + $0x1e4] sm:$0xf]
    %v308 = vld [vmem:[#allocation7 + $0x1e8] sm:$0xf]
    %v309 = vld [vmem:[#allocation7 + $0x1ec] sm:$0xf]
    %v310 = vld [vmem:[#allocation7 + $0x1f0] sm:$0xf]
    %v311 = vld [vmem:[#allocation7 + $0x1f4] sm:$0xf]
    %v312 = vld [vmem:[#allocation7 + $0x1f8] sm:$0xf]
    %v313 = vld [vmem:[#allocation7 + $0x1fc] sm:$0xf]
    %v314 = vld [vmem:[%s3] sm:$0x1]
    %v316 = vlaneseq
    %v317 = vshrl.u32 %v316, 7
    %v318 = vsub.s32 0, %v317
    %v319 = vrot.slane %v314, %v318
    %v385 = vunpack.c.l.b16 %v122
    %v386 = vunpack.c.h.b16 %v122
    %v387 = vunpack.c.l.b16 %v123
    %v388 = vunpack.c.h.b16 %v123
    %v389 = vunpack.c.l.b16 %v124
    %v390 = vunpack.c.h.b16 %v124
    %v391 = vunpack.c.l.b16 %v125
    %v392 = vunpack.c.h.b16 %v125
    %v393 = vunpack.c.l.b16 %v126
    %v394 = vunpack.c.h.b16 %v126
    %v395 = vunpack.c.l.b16 %v127
    %v396 = vunpack.c.h.b16 %v127
    %v397 = vunpack.c.l.b16 %v128
    %v398 = vunpack.c.h.b16 %v128
    %v399 = vunpack.c.l.b16 %v129
    %v400 = vunpack.c.h.b16 %v129
    %v401 = vunpack.c.l.b16 %v130
    %v402 = vunpack.c.h.b16 %v130
    %v403 = vunpack.c.l.b16 %v131
    %v404 = vunpack.c.h.b16 %v131
    %v405 = vunpack.c.l.b16 %v132
    %v406 = vunpack.c.h.b16 %v132
    %v407 = vunpack.c.l.b16 %v133
    %v408 = vunpack.c.h.b16 %v133
    %v409 = vunpack.c.l.b16 %v134
    %v410 = vunpack.c.h.b16 %v134
    %v411 = vunpack.c.l.b16 %v135
    %v412 = vunpack.c.h.b16 %v135
    %v413 = vunpack.c.l.b16 %v136
    %v414 = vunpack.c.h.b16 %v136
    %v415 = vunpack.c.l.b16 %v137
    %v416 = vunpack.c.h.b16 %v137
    %v417 = vunpack.c.l.b16 %v138
    %v418 = vunpack.c.h.b16 %v138
    %v419 = vunpack.c.l.b16 %v139
    %v420 = vunpack.c.h.b16 %v139
    %v421 = vunpack.c.l.b16 %v140
    %v422 = vunpack.c.h.b16 %v140
    %v423 = vunpack.c.l.b16 %v141
    %v424 = vunpack.c.h.b16 %v141
    %v425 = vunpack.c.l.b16 %v142
    %v426 = vunpack.c.h.b16 %v142
    %v427 = vunpack.c.l.b16 %v143
    %v428 = vunpack.c.h.b16 %v143
    %v429 = vunpack.c.l.b16 %v144
    %v430 = vunpack.c.h.b16 %v144
    %v431 = vunpack.c.l.b16 %v145
    %v432 = vunpack.c.h.b16 %v145
    %v433 = vunpack.c.l.b16 %v146
    %v434 = vunpack.c.h.b16 %v146
    %v435 = vunpack.c.l.b16 %v147
    %v436 = vunpack.c.h.b16 %v147
    %v437 = vunpack.c.l.b16 %v148
    %v438 = vunpack.c.h.b16 %v148
    %v439 = vunpack.c.l.b16 %v149
    %v440 = vunpack.c.h.b16 %v149
    %v441 = vunpack.c.l.b16 %v150
    %v442 = vunpack.c.h.b16 %v150
    %v443 = vunpack.c.l.b16 %v151
    %v444 = vunpack.c.h.b16 %v151
    %v445 = vunpack.c.l.b16 %v152
    %v446 = vunpack.c.h.b16 %v152
    %v447 = vunpack.c.l.b16 %v153
    %v448 = vunpack.c.h.b16 %v153
    %v449 = vunpack.c.l.b16 %v154
    %v450 = vunpack.c.h.b16 %v154
    %v451 = vunpack.c.l.b16 %v155
    %v452 = vunpack.c.h.b16 %v155
    %v453 = vunpack.c.l.b16 %v156
    %v454 = vunpack.c.h.b16 %v156
    %v455 = vunpack.c.l.b16 %v157
    %v456 = vunpack.c.h.b16 %v157
    %v457 = vunpack.c.l.b16 %v158
    %v458 = vunpack.c.h.b16 %v158
    %v459 = vunpack.c.l.b16 %v159
    %v460 = vunpack.c.h.b16 %v159
    %v461 = vunpack.c.l.b16 %v160
    %v462 = vunpack.c.h.b16 %v160
    %v463 = vunpack.c.l.b16 %v161
    %v464 = vunpack.c.h.b16 %v161
    %v465 = vunpack.c.l.b16 %v162
    %v466 = vunpack.c.h.b16 %v162
    %v467 = vunpack.c.l.b16 %v163
    %v468 = vunpack.c.h.b16 %v163
    %v469 = vunpack.c.l.b16 %v164
    %v470 = vunpack.c.h.b16 %v164
    %v471 = vunpack.c.l.b16 %v165
    %v472 = vunpack.c.h.b16 %v165
    %v473 = vunpack.c.l.b16 %v166
    %v474 = vunpack.c.h.b16 %v166
    %v475 = vunpack.c.l.b16 %v167
    %v476 = vunpack.c.h.b16 %v167
    %v477 = vunpack.c.l.b16 %v168
    %v478 = vunpack.c.h.b16 %v168
    %v479 = vunpack.c.l.b16 %v169
    %v480 = vunpack.c.h.b16 %v169
    %v481 = vunpack.c.l.b16 %v170
    %v482 = vunpack.c.h.b16 %v170
    %v483 = vunpack.c.l.b16 %v171
    %v484 = vunpack.c.h.b16 %v171
    %v485 = vunpack.c.l.b16 %v172
    %v486 = vunpack.c.h.b16 %v172
    %v487 = vunpack.c.l.b16 %v173
    %v488 = vunpack.c.h.b16 %v173
    %v489 = vunpack.c.l.b16 %v174
    %v490 = vunpack.c.h.b16 %v174
    %v491 = vunpack.c.l.b16 %v175
    %v492 = vunpack.c.h.b16 %v175
    %v493 = vunpack.c.l.b16 %v176
    %v494 = vunpack.c.h.b16 %v176
    %v495 = vunpack.c.l.b16 %v177
    %v496 = vunpack.c.h.b16 %v177
    %v497 = vunpack.c.l.b16 %v178
    %v498 = vunpack.c.h.b16 %v178
    %v499 = vunpack.c.l.b16 %v179
    %v500 = vunpack.c.h.b16 %v179
    %v501 = vunpack.c.l.b16 %v180
    %v502 = vunpack.c.h.b16 %v180
    %v503 = vunpack.c.l.b16 %v181
    %v504 = vunpack.c.h.b16 %v181
    %v505 = vunpack.c.l.b16 %v182
    %v506 = vunpack.c.h.b16 %v182
    %v507 = vunpack.c.l.b16 %v183
    %v508 = vunpack.c.h.b16 %v183
    %v509 = vunpack.c.l.b16 %v184
    %v510 = vunpack.c.h.b16 %v184
    %v511 = vunpack.c.l.b16 %v185
    %v512 = vunpack.c.h.b16 %v185
    %v513 = vpack.c.b16 %v393, %v385
    %v514 = vpack.c.b16 %v394, %v386
    %v515 = vpack.c.b16 %v395, %v387
    %v516 = vpack.c.b16 %v396, %v388
    %v517 = vpack.c.b16 %v397, %v389
    %v518 = vpack.c.b16 %v398, %v390
    %v519 = vpack.c.b16 %v399, %v391
    %v520 = vpack.c.b16 %v400, %v392
    %v521 = vpack.c.b16 %v409, %v401
    %v522 = vpack.c.b16 %v410, %v402
    %v523 = vpack.c.b16 %v411, %v403
    %v524 = vpack.c.b16 %v412, %v404
    %v525 = vpack.c.b16 %v413, %v405
    %v526 = vpack.c.b16 %v414, %v406
    %v527 = vpack.c.b16 %v415, %v407
    %v528 = vpack.c.b16 %v416, %v408
    %v529 = vpack.c.b16 %v425, %v417
    %v530 = vpack.c.b16 %v426, %v418
    %v531 = vpack.c.b16 %v427, %v419
    %v532 = vpack.c.b16 %v428, %v420
    %v533 = vpack.c.b16 %v429, %v421
    %v534 = vpack.c.b16 %v430, %v422
    %v535 = vpack.c.b16 %v431, %v423
    %v536 = vpack.c.b16 %v432, %v424
    %v537 = vpack.c.b16 %v441, %v433
    %v538 = vpack.c.b16 %v442, %v434
    %v539 = vpack.c.b16 %v443, %v435
    %v540 = vpack.c.b16 %v444, %v436
    %v541 = vpack.c.b16 %v445, %v437
    %v542 = vpack.c.b16 %v446, %v438
    %v543 = vpack.c.b16 %v447, %v439
    %v544 = vpack.c.b16 %v448, %v440
    %v545 = vpack.c.b16 %v457, %v449
    %v546 = vpack.c.b16 %v458, %v450
    %v547 = vpack.c.b16 %v459, %v451
    %v548 = vpack.c.b16 %v460, %v452
    %v549 = vpack.c.b16 %v461, %v453
    %v550 = vpack.c.b16 %v462, %v454
    %v551 = vpack.c.b16 %v463, %v455
    %v552 = vpack.c.b16 %v464, %v456
    %v553 = vpack.c.b16 %v473, %v465
    %v554 = vpack.c.b16 %v474, %v466
    %v555 = vpack.c.b16 %v475, %v467
    %v556 = vpack.c.b16 %v476, %v468
    %v557 = vpack.c.b16 %v477, %v469
    %v558 = vpack.c.b16 %v478, %v470
    %v559 = vpack.c.b16 %v479, %v471
    %v560 = vpack.c.b16 %v480, %v472
    %v561 = vpack.c.b16 %v489, %v481
    %v562 = vpack.c.b16 %v490, %v482
    %v563 = vpack.c.b16 %v491, %v483
    %v564 = vpack.c.b16 %v492, %v484
    %v565 = vpack.c.b16 %v493, %v485
    %v566 = vpack.c.b16 %v494, %v486
    %v567 = vpack.c.b16 %v495, %v487
    %v568 = vpack.c.b16 %v496, %v488
    %v569 = vpack.c.b16 %v505, %v497
    %v570 = vpack.c.b16 %v506, %v498
    %v571 = vpack.c.b16 %v507, %v499
    %v572 = vpack.c.b16 %v508, %v500
    %v573 = vpack.c.b16 %v509, %v501
    %v574 = vpack.c.b16 %v510, %v502
    %v575 = vpack.c.b16 %v511, %v503
    %v576 = vpack.c.b16 %v512, %v504
    %v769 = vunpack.c.l.b16 %v186
    %v770 = vunpack.c.l.b16 %v187
    %v771 = vunpack.c.l.b16 %v188
    %v772 = vunpack.c.l.b16 %v189
    %v773 = vunpack.c.l.b16 %v190
    %v774 = vunpack.c.l.b16 %v191
    %v775 = vunpack.c.l.b16 %v192
    %v776 = vunpack.c.l.b16 %v193
    %v777 = vunpack.c.l.b16 %v194
    %v778 = vunpack.c.l.b16 %v195
    %v779 = vunpack.c.l.b16 %v196
    %v780 = vunpack.c.l.b16 %v197
    %v781 = vunpack.c.l.b16 %v198
    %v782 = vunpack.c.l.b16 %v199
    %v783 = vunpack.c.l.b16 %v200
    %v784 = vunpack.c.l.b16 %v201
    %v785 = vunpack.c.l.b16 %v202
    %v786 = vunpack.c.l.b16 %v203
    %v787 = vunpack.c.l.b16 %v204
    %v788 = vunpack.c.l.b16 %v205
    %v789 = vunpack.c.l.b16 %v206
    %v790 = vunpack.c.l.b16 %v207
    %v791 = vunpack.c.l.b16 %v208
    %v792 = vunpack.c.l.b16 %v209
    %v793 = vunpack.c.l.b16 %v210
    %v794 = vunpack.c.l.b16 %v211
    %v795 = vunpack.c.l.b16 %v212
    %v796 = vunpack.c.l.b16 %v213
    %v797 = vunpack.c.l.b16 %v214
    %v798 = vunpack.c.l.b16 %v215
    %v799 = vunpack.c.l.b16 %v216
    %v800 = vunpack.c.l.b16 %v217
    %v801 = vunpack.c.l.b16 %v218
    %v802 = vunpack.c.l.b16 %v219
    %v803 = vunpack.c.l.b16 %v220
    %v804 = vunpack.c.l.b16 %v221
    %v805 = vunpack.c.l.b16 %v222
    %v806 = vunpack.c.l.b16 %v223
    %v807 = vunpack.c.l.b16 %v224
    %v808 = vunpack.c.l.b16 %v225
    %v809 = vunpack.c.l.b16 %v226
    %v810 = vunpack.c.l.b16 %v227
    %v811 = vunpack.c.l.b16 %v228
    %v812 = vunpack.c.l.b16 %v229
    %v813 = vunpack.c.l.b16 %v230
    %v814 = vunpack.c.l.b16 %v231
    %v815 = vunpack.c.l.b16 %v232
    %v816 = vunpack.c.l.b16 %v233
    %v817 = vunpack.c.l.b16 %v234
    %v818 = vunpack.c.l.b16 %v235
    %v819 = vunpack.c.l.b16 %v236
    %v820 = vunpack.c.l.b16 %v237
    %v821 = vunpack.c.l.b16 %v238
    %v822 = vunpack.c.l.b16 %v239
    %v823 = vunpack.c.l.b16 %v240
    %v824 = vunpack.c.l.b16 %v241
    %v825 = vunpack.c.l.b16 %v242
    %v826 = vunpack.c.l.b16 %v243
    %v827 = vunpack.c.l.b16 %v244
    %v828 = vunpack.c.l.b16 %v245
    %v829 = vunpack.c.l.b16 %v246
    %v830 = vunpack.c.l.b16 %v247
    %v831 = vunpack.c.l.b16 %v248
    %v832 = vunpack.c.l.b16 %v249
    %v833 = vunpack.c.l.b16 %v250
    %v834 = vunpack.c.l.b16 %v251
    %v835 = vunpack.c.l.b16 %v252
    %v836 = vunpack.c.l.b16 %v253
    %v837 = vunpack.c.l.b16 %v254
    %v838 = vunpack.c.l.b16 %v255
    %v839 = vunpack.c.l.b16 %v256
    %v840 = vunpack.c.l.b16 %v257
    %v841 = vunpack.c.l.b16 %v258
    %v842 = vunpack.c.l.b16 %v259
    %v843 = vunpack.c.l.b16 %v260
    %v844 = vunpack.c.l.b16 %v261
    %v845 = vunpack.c.l.b16 %v262
    %v846 = vunpack.c.l.b16 %v263
    %v847 = vunpack.c.l.b16 %v264
    %v848 = vunpack.c.l.b16 %v265
    %v849 = vunpack.c.l.b16 %v266
    %v850 = vunpack.c.l.b16 %v267
    %v851 = vunpack.c.l.b16 %v268
    %v852 = vunpack.c.l.b16 %v269
    %v853 = vunpack.c.l.b16 %v270
    %v854 = vunpack.c.l.b16 %v271
    %v855 = vunpack.c.l.b16 %v272
    %v856 = vunpack.c.l.b16 %v273
    %v857 = vunpack.c.l.b16 %v274
    %v858 = vunpack.c.l.b16 %v275
    %v859 = vunpack.c.l.b16 %v276
    %v860 = vunpack.c.l.b16 %v277
    %v861 = vunpack.c.l.b16 %v278
    %v862 = vunpack.c.l.b16 %v279
    %v863 = vunpack.c.l.b16 %v280
    %v864 = vunpack.c.l.b16 %v281
    %v865 = vunpack.c.l.b16 %v282
    %v866 = vunpack.c.l.b16 %v283
    %v867 = vunpack.c.l.b16 %v284
    %v868 = vunpack.c.l.b16 %v285
    %v869 = vunpack.c.l.b16 %v286
    %v870 = vunpack.c.l.b16 %v287
    %v871 = vunpack.c.l.b16 %v288
    %v872 = vunpack.c.l.b16 %v289
    %v873 = vunpack.c.l.b16 %v290
    %v874 = vunpack.c.l.b16 %v291
    %v875 = vunpack.c.l.b16 %v292
    %v876 = vunpack.c.l.b16 %v293
    %v877 = vunpack.c.l.b16 %v294
    %v878 = vunpack.c.l.b16 %v295
    %v879 = vunpack.c.l.b16 %v296
    %v880 = vunpack.c.l.b16 %v297
    %v881 = vunpack.c.l.b16 %v298
    %v882 = vunpack.c.l.b16 %v299
    %v883 = vunpack.c.l.b16 %v300
    %v884 = vunpack.c.l.b16 %v301
    %v885 = vunpack.c.l.b16 %v302
    %v886 = vunpack.c.l.b16 %v303
    %v887 = vunpack.c.l.b16 %v304
    %v888 = vunpack.c.l.b16 %v305
    %v889 = vunpack.c.l.b16 %v306
    %v890 = vunpack.c.l.b16 %v307
    %v891 = vunpack.c.l.b16 %v308
    %v892 = vunpack.c.l.b16 %v309
    %v893 = vunpack.c.l.b16 %v310
    %v894 = vunpack.c.l.b16 %v311
    %v895 = vunpack.c.l.b16 %v312
    %v896 = vunpack.c.l.b16 %v313
    %v897 = vpack.c.b16 %v770, %v769
    %v898 = vpack.c.b16 %v772, %v771
    %v899 = vpack.c.b16 %v774, %v773
    %v900 = vpack.c.b16 %v776, %v775
    %v901 = vpack.c.b16 %v778, %v777
    %v902 = vpack.c.b16 %v780, %v779
    %v903 = vpack.c.b16 %v782, %v781
    %v904 = vpack.c.b16 %v784, %v783
    %v905 = vpack.c.b16 %v786, %v785
    %v906 = vpack.c.b16 %v788, %v787
    %v907 = vpack.c.b16 %v790, %v789
    %v908 = vpack.c.b16 %v792, %v791
    %v909 = vpack.c.b16 %v794, %v793
    %v910 = vpack.c.b16 %v796, %v795
    %v911 = vpack.c.b16 %v798, %v797
    %v912 = vpack.c.b16 %v800, %v799
    %v913 = vpack.c.b16 %v802, %v801
    %v914 = vpack.c.b16 %v804, %v803
    %v915 = vpack.c.b16 %v806, %v805
    %v916 = vpack.c.b16 %v808, %v807
    %v917 = vpack.c.b16 %v810, %v809
    %v918 = vpack.c.b16 %v812, %v811
    %v919 = vpack.c.b16 %v814, %v813
    %v920 = vpack.c.b16 %v816, %v815
    %v921 = vpack.c.b16 %v818, %v817
    %v922 = vpack.c.b16 %v820, %v819
    %v923 = vpack.c.b16 %v822, %v821
    %v924 = vpack.c.b16 %v824, %v823
    %v925 = vpack.c.b16 %v826, %v825
    %v926 = vpack.c.b16 %v828, %v827
    %v927 = vpack.c.b16 %v830, %v829
    %v928 = vpack.c.b16 %v832, %v831
    %v929 = vpack.c.b16 %v834, %v833
    %v930 = vpack.c.b16 %v836, %v835
    %v931 = vpack.c.b16 %v838, %v837
    %v932 = vpack.c.b16 %v840, %v839
    %v933 = vpack.c.b16 %v842, %v841
    %v934 = vpack.c.b16 %v844, %v843
    %v935 = vpack.c.b16 %v846, %v845
    %v936 = vpack.c.b16 %v848, %v847
    %v937 = vpack.c.b16 %v850, %v849
    %v938 = vpack.c.b16 %v852, %v851
    %v939 = vpack.c.b16 %v854, %v853
    %v940 = vpack.c.b16 %v856, %v855
    %v941 = vpack.c.b16 %v858, %v857
    %v942 = vpack.c.b16 %v860, %v859
    %v943 = vpack.c.b16 %v862, %v861
    %v944 = vpack.c.b16 %v864, %v863
    %v945 = vpack.c.b16 %v866, %v865
    %v946 = vpack.c.b16 %v868, %v867
    %v947 = vpack.c.b16 %v870, %v869
    %v948 = vpack.c.b16 %v872, %v871
    %v949 = vpack.c.b16 %v874, %v873
    %v950 = vpack.c.b16 %v876, %v875
    %v951 = vpack.c.b16 %v878, %v877
    %v952 = vpack.c.b16 %v880, %v879
    %v953 = vpack.c.b16 %v882, %v881
    %v954 = vpack.c.b16 %v884, %v883
    %v955 = vpack.c.b16 %v886, %v885
    %v956 = vpack.c.b16 %v888, %v887
    %v957 = vpack.c.b16 %v890, %v889
    %v958 = vpack.c.b16 %v892, %v891
    %v959 = vpack.c.b16 %v894, %v893
    %v960 = vpack.c.b16 %v896, %v895
    %1025 = vmatprep.subr.bf16.mxu0 0
    %1026 = vmatpush1.bf16.msra.mxu0 %v897
    %1027 = vmatprep.subr.bf16.mxu0 0
    %1028 = vmatpush1.bf16.msra.mxu0 %v898
    %1029 = vmatprep.subr.bf16.mxu0 0
    %1030 = vmatpush1.bf16.msra.mxu0 %v899
    %1031 = vmatprep.subr.bf16.mxu0 0
    %1032 = vmatpush1.bf16.msra.mxu0 %v900
    %1033 = vmatprep.subr.bf16.mxu0 0
    %1034 = vmatpush1.bf16.msra.mxu0 %v901
    %1035 = vmatprep.subr.bf16.mxu0 0
    %1036 = vmatpush1.bf16.msra.mxu0 %v902
    %1037 = vmatprep.subr.bf16.mxu0 0
    %1038 = vmatpush1.bf16.msra.mxu0 %v903
    %1039 = vmatprep.subr.bf16.mxu0 0
    %1040 = vmatpush1.bf16.msra.mxu0 %v904
    %1041 = vmatprep.subr.bf16.mxu0 0
    %1042 = vmatpush1.bf16.msra.mxu0 %v905
    %1043 = vmatprep.subr.bf16.mxu0 0
    %1044 = vmatpush1.bf16.msra.mxu0 %v906
    %1045 = vmatprep.subr.bf16.mxu0 0
    %1046 = vmatpush1.bf16.msra.mxu0 %v907
    %1047 = vmatprep.subr.bf16.mxu0 0
    %1048 = vmatpush1.bf16.msra.mxu0 %v908
    %1049 = vmatprep.subr.bf16.mxu0 0
    %1050 = vmatpush1.bf16.msra.mxu0 %v909
    %1051 = vmatprep.subr.bf16.mxu0 0
    %1052 = vmatpush1.bf16.msra.mxu0 %v910
    %1053 = vmatprep.subr.bf16.mxu0 0
    %1054 = vmatpush1.bf16.msra.mxu0 %v911
    %1055 = vmatprep.subr.bf16.mxu0 0
    %1056 = vmatpush1.bf16.msra.mxu0 %v912
    %1057 = vmatprep.mubr.bf16.mxu0 %v514
    %1058 = vmatmul.mubr.bf16.gmra.mrb[0].mxu0 %v513
    %v1059 = vpop.f32.mrb[0].mxu0
    %v1060 = vadd.f32 %v319, %v1059
    %v1061 = vpop.f32.mrb[0].mxu0
    %v1062 = vpop.f32.mrb[0].mxu0
    %v1063 = vadd.f32 %v319, %v1062
    %v1064 = vpop.f32.mrb[0].mxu0
    %1065 = vmatprep.mubr.bf16.mxu0 %v522
    %1066 = vmatmul.mubr.bf16.gmra.mrb[0].mxu0 %v521
    %v1067 = vpop.f32.mrb[0].mxu0
    %v1068 = vadd.f32 %v319, %v1067
    %v1069 = vpop.f32.mrb[0].mxu0
    %v1070 = vpop.f32.mrb[0].mxu0
    %v1071 = vadd.f32 %v319, %v1070
    %v1072 = vpop.f32.mrb[0].mxu0
    %1073 = vmatprep.mubr.bf16.mxu0 %v530
    %1074 = vmatmul.mubr.bf16.gmra.mrb[0].mxu0 %v529
    %v1075 = vpop.f32.mrb[0].mxu0
    %v1076 = vadd.f32 %v319, %v1075
    %v1077 = vpop.f32.mrb[0].mxu0
    %v1078 = vpop.f32.mrb[0].mxu0
    %v1079 = vadd.f32 %v319, %v1078
    %v1080 = vpop.f32.mrb[0].mxu0
    %1081 = vmatprep.mubr.bf16.mxu0 %v538
    %1082 = vmatmul.mubr.bf16.gmra.mrb[0].mxu0 %v537
    %v1083 = vpop.f32.mrb[0].mxu0
    %v1084 = vadd.f32 %v319, %v1083
    %v1085 = vpop.f32.mrb[0].mxu0
    %v1086 = vpop.f32.mrb[0].mxu0
    %v1087 = vadd.f32 %v319, %v1086
    %v1088 = vpop.f32.mrb[0].mxu0
    %1089 = vmatprep.mubr.bf16.mxu0 %v546
    %1090 = vmatmul.mubr.bf16.gmra.mrb[0].mxu0 %v545
    %v1091 = vpop.f32.mrb[0].mxu0
    %v1092 = vadd.f32 %v319, %v1091
    %v1093 = vpop.f32.mrb[0].mxu0
    %v1094 = vpop.f32.mrb[0].mxu0
    %v1095 = vadd.f32 %v319, %v1094
    %v1096 = vpop.f32.mrb[0].mxu0
    %1097 = vmatprep.mubr.bf16.mxu0 %v554
    %1098 = vmatmul.mubr.bf16.gmra.mrb[0].mxu0 %v553
    %v1099 = vpop.f32.mrb[0].mxu0
    %v1100 = vadd.f32 %v319, %v1099
    %v1101 = vpop.f32.mrb[0].mxu0
    %v1102 = vpop.f32.mrb[0].mxu0
    %v1103 = vadd.f32 %v319, %v1102
    %v1104 = vpop.f32.mrb[0].mxu0
    %1105 = vmatprep.mubr.bf16.mxu0 %v562
    %1106 = vmatmul.mubr.bf16.gmra.mrb[0].mxu0 %v561
    %v1107 = vpop.f32.mrb[0].mxu0
    %v1108 = vadd.f32 %v319, %v1107
    %v1109 = vpop.f32.mrb[0].mxu0
    %v1110 = vpop.f32.mrb[0].mxu0
    %v1111 = vadd.f32 %v319, %v1110
    %v1112 = vpop.f32.mrb[0].mxu0
    %1113 = vmatprep.mubr.bf16.mxu0 %v570
    %1114 = vmatmul.mubr.bf16.gmra.mrb[0].mxu0 %v569
    %v1115 = vpop.f32.mrb[0].mxu0
    %v1116 = vadd.f32 %v319, %v1115
    %v1117 = vpop.f32.mrb[0].mxu0
    %v1118 = vpop.f32.mrb[0].mxu0
    %v1119 = vadd.f32 %v319, %v1118
    %v1120 = vpop.f32.mrb[0].mxu0
    %1121 = vdwg.mxu0
    %1122 = vmatprep.subr.bf16.mxu0 0
    %1123 = vmatpush1.bf16.msra.mxu0 %v913
    %1124 = vmatprep.subr.bf16.mxu0 0
    %1125 = vmatpush1.bf16.msra.mxu0 %v914
    %1126 = vmatprep.subr.bf16.mxu0 0
    %1127 = vmatpush1.bf16.msra.mxu0 %v915
    %1128 = vmatprep.subr.bf16.mxu0 0
    %1129 = vmatpush1.bf16.msra.mxu0 %v916
    %1130 = vmatprep.subr.bf16.mxu0 0
    %1131 = vmatpush1.bf16.msra.mxu0 %v917
    %1132 = vmatprep.subr.bf16.mxu0 0
    %1133 = vmatpush1.bf16.msra.mxu0 %v918
    %1134 = vmatprep.subr.bf16.mxu0 0
    %1135 = vmatpush1.bf16.msra.mxu0 %v919
    %1136 = vmatprep.subr.bf16.mxu0 0
    %1137 = vmatpush1.bf16.msra.mxu0 %v920
    %1138 = vmatprep.subr.bf16.mxu0 0
    %1139 = vmatpush1.bf16.msra.mxu0 %v921
    %1140 = vmatprep.subr.bf16.mxu0 0
    %1141 = vmatpush1.bf16.msra.mxu0 %v922
    %1142 = vmatprep.subr.bf16.mxu0 0
    %1143 = vmatpush1.bf16.msra.mxu0 %v923
    %1144 = vmatprep.subr.bf16.mxu0 0
    %1145 = vmatpush1.bf16.msra.mxu0 %v924
    %1146 = vmatprep.subr.bf16.mxu0 0
    %1147 = vmatpush1.bf16.msra.mxu0 %v925
    %1148 = vmatprep.subr.bf16.mxu0 0
    %1149 = vmatpush1.bf16.msra.mxu0 %v926
    %1150 = vmatprep.subr.bf16.mxu0 0
    %1151 = vmatpush1.bf16.msra.mxu0 %v927
    %1152 = vmatprep.subr.bf16.mxu0 0
    %1153 = vmatpush1.bf16.msra.mxu0 %v928
    %1154 = vmatprep.mubr.bf16.mxu0 %v516
    %1155 = vmatmul.mubr.bf16.gmra.mrb[0].mxu0 %v515
    %v1156 = vpop.f32.mrb[0].mxu0
    %v1157 = vadd.f32 %v1060, %v1156
    %v1158 = vpop.f32.mrb[0].mxu0
    %v1159 = vpop.f32.mrb[0].mxu0
    %v1160 = vadd.f32 %v1063, %v1159
    %v1161 = vpop.f32.mrb[0].mxu0
    %1162 = vmatprep.mubr.bf16.mxu0 %v524
    %1163 = vmatmul.mubr.bf16.gmra.mrb[0].mxu0 %v523
    %v1164 = vpop.f32.mrb[0].mxu0
    %v1165 = vadd.f32 %v1068, %v1164
    %v1166 = vpop.f32.mrb[0].mxu0
    %v1167 = vpop.f32.mrb[0].mxu0
    %v1168 = vadd.f32 %v1071, %v1167
    %v1169 = vpop.f32.mrb[0].mxu0
    %1170 = vmatprep.mubr.bf16.mxu0 %v532
    %1171 = vmatmul.mubr.bf16.gmra.mrb[0].mxu0 %v531
    %v1172 = vpop.f32.mrb[0].mxu0
    %v1173 = vadd.f32 %v1076, %v1172
    %v1174 = vpop.f32.mrb[0].mxu0
    %v1175 = vpop.f32.mrb[0].mxu0
    %v1176 = vadd.f32 %v1079, %v1175
    %v1177 = vpop.f32.mrb[0].mxu0
    %1178 = vmatprep.mubr.bf16.mxu0 %v540
    %1179 = vmatmul.mubr.bf16.gmra.mrb[0].mxu0 %v539
    %v1180 = vpop.f32.mrb[0].mxu0
    %v1181 = vadd.f32 %v1084, %v1180
    %v1182 = vpop.f32.mrb[0].mxu0
    %v1183 = vpop.f32.mrb[0].mxu0
    %v1184 = vadd.f32 %v1087, %v1183
    %v1185 = vpop.f32.mrb[0].mxu0
    %1186 = vmatprep.mubr.bf16.mxu0 %v548
    %1187 = vmatmul.mubr.bf16.gmra.mrb[0].mxu0 %v547
    %v1188 = vpop.f32.mrb[0].mxu0
    %v1189 = vadd.f32 %v1092, %v1188
    %v1190 = vpop.f32.mrb[0].mxu0
    %v1191 = vpop.f32.mrb[0].mxu0
    %v1192 = vadd.f32 %v1095, %v1191
    %v1193 = vpop.f32.mrb[0].mxu0
    %1194 = vmatprep.mubr.bf16.mxu0 %v556
    %1195 = vmatmul.mubr.bf16.gmra.mrb[0].mxu0 %v555
    %v1196 = vpop.f32.mrb[0].mxu0
    %v1197 = vadd.f32 %v1100, %v1196
    %v1198 = vpop.f32.mrb[0].mxu0
    %v1199 = vpop.f32.mrb[0].mxu0
    %v1200 = vadd.f32 %v1103, %v1199
    %v1201 = vpop.f32.mrb[0].mxu0
    %1202 = vmatprep.mubr.bf16.mxu0 %v564
    %1203 = vmatmul.mubr.bf16.gmra.mrb[0].mxu0 %v563
    %v1204 = vpop.f32.mrb[0].mxu0
    %v1205 = vadd.f32 %v1108, %v1204
    %v1206 = vpop.f32.mrb[0].mxu0
    %v1207 = vpop.f32.mrb[0].mxu0
    %v1208 = vadd.f32 %v1111, %v1207
    %v1209 = vpop.f32.mrb[0].mxu0
    %1210 = vmatprep.mubr.bf16.mxu0 %v572
    %1211 = vmatmul.mubr.bf16.gmra.mrb[0].mxu0 %v571
    %v1212 = vpop.f32.mrb[0].mxu0
    %v1213 = vadd.f32 %v1116, %v1212
    %v1214 = vpop.f32.mrb[0].mxu0
    %v1215 = vpop.f32.mrb[0].mxu0
    %v1216 = vadd.f32 %v1119, %v1215
    %v1217 = vpop.f32.mrb[0].mxu0
    %1218 = vdwg.mxu0
    %1219 = vmatprep.subr.bf16.mxu0 0
    %1220 = vmatpush1.bf16.msra.mxu0 %v929
    %1221 = vmatprep.subr.bf16.mxu0 0
    %1222 = vmatpush1.bf16.msra.mxu0 %v930
    %1223 = vmatprep.subr.bf16.mxu0 0
    %1224 = vmatpush1.bf16.msra.mxu0 %v931
    %1225 = vmatprep.subr.bf16.mxu0 0
    %1226 = vmatpush1.bf16.msra.mxu0 %v932
    %1227 = vmatprep.subr.bf16.mxu0 0
    %1228 = vmatpush1.bf16.msra.mxu0 %v933
    %1229 = vmatprep.subr.bf16.mxu0 0
    %1230 = vmatpush1.bf16.msra.mxu0 %v934
    %1231 = vmatprep.subr.bf16.mxu0 0
    %1232 = vmatpush1.bf16.msra.mxu0 %v935
    %1233 = vmatprep.subr.bf16.mxu0 0
    %1234 = vmatpush1.bf16.msra.mxu0 %v936
    %1235 = vmatprep.subr.bf16.mxu0 0
    %1236 = vmatpush1.bf16.msra.mxu0 %v937
    %1237 = vmatprep.subr.bf16.mxu0 0
    %1238 = vmatpush1.bf16.msra.mxu0 %v938
    %1239 = vmatprep.subr.bf16.mxu0 0
    %1240 = vmatpush1.bf16.msra.mxu0 %v939
    %1241 = vmatprep.subr.bf16.mxu0 0
    %1242 = vmatpush1.bf16.msra.mxu0 %v940
    %1243 = vmatprep.subr.bf16.mxu0 0
    %1244 = vmatpush1.bf16.msra.mxu0 %v941
    %1245 = vmatprep.subr.bf16.mxu0 0
    %1246 = vmatpush1.bf16.msra.mxu0 %v942
    %1247 = vmatprep.subr.bf16.mxu0 0
    %1248 = vmatpush1.bf16.msra.mxu0 %v943
    %1249 = vmatprep.subr.bf16.mxu0 0
    %1250 = vmatpush1.bf16.msra.mxu0 %v944
    %1251 = vmatprep.mubr.bf16.mxu0 %v518
    %1252 = vmatmul.mubr.bf16.gmra.mrb[0].mxu0 %v517
    %v1253 = vpop.f32.mrb[0].mxu0
    %v1254 = vadd.f32 %v1157, %v1253
    %v1255 = vpop.f32.mrb[0].mxu0
    %v1256 = vpop.f32.mrb[0].mxu0
    %v1257 = vadd.f32 %v1160, %v1256
    %v1258 = vpop.f32.mrb[0].mxu0
    %1259 = vmatprep.mubr.bf16.mxu0 %v526
    %1260 = vmatmul.mubr.bf16.gmra.mrb[0].mxu0 %v525
    %v1261 = vpop.f32.mrb[0].mxu0
    %v1262 = vadd.f32 %v1165, %v1261
    %v1263 = vpop.f32.mrb[0].mxu0
    %v1264 = vpop.f32.mrb[0].mxu0
    %v1265 = vadd.f32 %v1168, %v1264
    %v1266 = vpop.f32.mrb[0].mxu0
    %1267 = vmatprep.mubr.bf16.mxu0 %v534
    %1268 = vmatmul.mubr.bf16.gmra.mrb[0].mxu0 %v533
    %v1269 = vpop.f32.mrb[0].mxu0
    %v1270 = vadd.f32 %v1173, %v1269
    %v1271 = vpop.f32.mrb[0].mxu0
    %v1272 = vpop.f32.mrb[0].mxu0
    %v1273 = vadd.f32 %v1176, %v1272
    %v1274 = vpop.f32.mrb[0].mxu0
    %1275 = vmatprep.mubr.bf16.mxu0 %v542
    %1276 = vmatmul.mubr.bf16.gmra.mrb[0].mxu0 %v541
    %v1277 = vpop.f32.mrb[0].mxu0
    %v1278 = vadd.f32 %v1181, %v1277
    %v1279 = vpop.f32.mrb[0].mxu0
    %v1280 = vpop.f32.mrb[0].mxu0
    %v1281 = vadd.f32 %v1184, %v1280
    %v1282 = vpop.f32.mrb[0].mxu0
    %1283 = vmatprep.mubr.bf16.mxu0 %v550
    %1284 = vmatmul.mubr.bf16.gmra.mrb[0].mxu0 %v549
    %v1285 = vpop.f32.mrb[0].mxu0
    %v1286 = vadd.f32 %v1189, %v1285
    %v1287 = vpop.f32.mrb[0].mxu0
    %v1288 = vpop.f32.mrb[0].mxu0
    %v1289 = vadd.f32 %v1192, %v1288
    %v1290 = vpop.f32.mrb[0].mxu0
    %1291 = vmatprep.mubr.bf16.mxu0 %v558
    %1292 = vmatmul.mubr.bf16.gmra.mrb[0].mxu0 %v557
    %v1293 = vpop.f32.mrb[0].mxu0
    %v1294 = vadd.f32 %v1197, %v1293
    %v1295 = vpop.f32.mrb[0].mxu0
    %v1296 = vpop.f32.mrb[0].mxu0
    %v1297 = vadd.f32 %v1200, %v1296
    %v1298 = vpop.f32.mrb[0].mxu0
    %1299 = vmatprep.mubr.bf16.mxu0 %v566
    %1300 = vmatmul.mubr.bf16.gmra.mrb[0].mxu0 %v565
    %v1301 = vpop.f32.mrb[0].mxu0
    %v1302 = vadd.f32 %v1205, %v1301
    %v1303 = vpop.f32.mrb[0].mxu0
    %v1304 = vpop.f32.mrb[0].mxu0
    %v1305 = vadd.f32 %v1208, %v1304
    %v1306 = vpop.f32.mrb[0].mxu0
    %1307 = vmatprep.mubr.bf16.mxu0 %v574
    %1308 = vmatmul.mubr.bf16.gmra.mrb[0].mxu0 %v573
    %v1309 = vpop.f32.mrb[0].mxu0
    %v1310 = vadd.f32 %v1213, %v1309
    %v1311 = vpop.f32.mrb[0].mxu0
    %v1312 = vpop.f32.mrb[0].mxu0
    %v1313 = vadd.f32 %v1216, %v1312
    %v1314 = vpop.f32.mrb[0].mxu0
    %1315 = vdwg.mxu0
    %1316 = vmatprep.subr.bf16.mxu0 0
    %1317 = vmatpush1.bf16.msra.mxu0 %v945
    %1318 = vmatprep.subr.bf16.mxu0 0
    %1319 = vmatpush1.bf16.msra.mxu0 %v946
    %1320 = vmatprep.subr.bf16.mxu0 0
    %1321 = vmatpush1.bf16.msra.mxu0 %v947
    %1322 = vmatprep.subr.bf16.mxu0 0
    %1323 = vmatpush1.bf16.msra.mxu0 %v948
    %1324 = vmatprep.subr.bf16.mxu0 0
    %1325 = vmatpush1.bf16.msra.mxu0 %v949
    %1326 = vmatprep.subr.bf16.mxu0 0
    %1327 = vmatpush1.bf16.msra.mxu0 %v950
    %1328 = vmatprep.subr.bf16.mxu0 0
    %1329 = vmatpush1.bf16.msra.mxu0 %v951
    %1330 = vmatprep.subr.bf16.mxu0 0
    %1331 = vmatpush1.bf16.msra.mxu0 %v952
    %1332 = vmatprep.subr.bf16.mxu0 0
    %1333 = vmatpush1.bf16.msra.mxu0 %v953
    %1334 = vmatprep.subr.bf16.mxu0 0
    %1335 = vmatpush1.bf16.msra.mxu0 %v954
    %1336 = vmatprep.subr.bf16.mxu0 0
    %1337 = vmatpush1.bf16.msra.mxu0 %v955
    %1338 = vmatprep.subr.bf16.mxu0 0
    %1339 = vmatpush1.bf16.msra.mxu0 %v956
    %1340 = vmatprep.subr.bf16.mxu0 0
    %1341 = vmatpush1.bf16.msra.mxu0 %v957
    %1342 = vmatprep.subr.bf16.mxu0 0
    %1343 = vmatpush1.bf16.msra.mxu0 %v958
    %1344 = vmatprep.subr.bf16.mxu0 0
    %1345 = vmatpush1.bf16.msra.mxu0 %v959
    %1346 = vmatprep.subr.bf16.mxu0 0
    %1347 = vmatpush1.bf16.msra.mxu0 %v960
    %1348 = vmatprep.mubr.bf16.mxu0 %v520
    %1349 = vmatmul.mubr.bf16.gmra.mrb[0].mxu0 %v519
    %v1350 = vpop.f32.mrb[0].mxu0
    %v1351 = vadd.f32 %v1254, %v1350
    %v1352 = vpop.f32.mrb[0].mxu0
    %v1353 = vpop.f32.mrb[0].mxu0
    %v1354 = vadd.f32 %v1257, %v1353
    %v1355 = vpop.f32.mrb[0].mxu0
    %1356 = vmatprep.mubr.bf16.mxu0 %v528
    %1357 = vmatmul.mubr.bf16.gmra.mrb[0].mxu0 %v527
    %v1358 = vpop.f32.mrb[0].mxu0
    %v1359 = vadd.f32 %v1262, %v1358
    %v1360 = vpop.f32.mrb[0].mxu0
    %v1361 = vpop.f32.mrb[0].mxu0
    %v1362 = vadd.f32 %v1265, %v1361
    %v1363 = vpop.f32.mrb[0].mxu0
    %1364 = vmatprep.mubr.bf16.mxu0 %v536
    %1365 = vmatmul.mubr.bf16.gmra.mrb[0].mxu0 %v535
    %v1366 = vpop.f32.mrb[0].mxu0
    %v1367 = vadd.f32 %v1270, %v1366
    %v1368 = vpop.f32.mrb[0].mxu0
    %v1369 = vpop.f32.mrb[0].mxu0
    %v1370 = vadd.f32 %v1273, %v1369
    %v1371 = vpop.f32.mrb[0].mxu0
    %1372 = vmatprep.mubr.bf16.mxu0 %v544
    %1373 = vmatmul.mubr.bf16.gmra.mrb[0].mxu0 %v543
    %v1374 = vpop.f32.mrb[0].mxu0
    %v1375 = vadd.f32 %v1278, %v1374
    %v1376 = vpop.f32.mrb[0].mxu0
    %v1377 = vpop.f32.mrb[0].mxu0
    %v1378 = vadd.f32 %v1281, %v1377
    %v1379 = vpop.f32.mrb[0].mxu0
    %1380 = vmatprep.mubr.bf16.mxu0 %v552
    %1381 = vmatmul.mubr.bf16.gmra.mrb[0].mxu0 %v551
    %v1382 = vpop.f32.mrb[0].mxu0
    %v1383 = vadd.f32 %v1286, %v1382
    %v1384 = vpop.f32.mrb[0].mxu0
    %v1385 = vpop.f32.mrb[0].mxu0
    %v1386 = vadd.f32 %v1289, %v1385
    %v1387 = vpop.f32.mrb[0].mxu0
    %1388 = vmatprep.mubr.bf16.mxu0 %v560
    %1389 = vmatmul.mubr.bf16.gmra.mrb[0].mxu0 %v559
    %v1390 = vpop.f32.mrb[0].mxu0
    %v1391 = vadd.f32 %v1294, %v1390
    %v1392 = vpop.f32.mrb[0].mxu0
    %v1393 = vpop.f32.mrb[0].mxu0
    %v1394 = vadd.f32 %v1297, %v1393
    %v1395 = vpop.f32.mrb[0].mxu0
    %1396 = vmatprep.mubr.bf16.mxu0 %v568
    %1397 = vmatmul.mubr.bf16.gmra.mrb[0].mxu0 %v567
    %v1398 = vpop.f32.mrb[0].mxu0
    %v1399 = vadd.f32 %v1302, %v1398
    %v1400 = vpop.f32.mrb[0].mxu0
    %v1401 = vpop.f32.mrb[0].mxu0
    %v1402 = vadd.f32 %v1305, %v1401
    %v1403 = vpop.f32.mrb[0].mxu0
    %1404 = vmatprep.mubr.bf16.mxu0 %v576
    %1405 = vmatmul.mubr.bf16.gmra.mrb[0].mxu0 %v575
    %v1406 = vpop.f32.mrb[0].mxu0
    %v1407 = vadd.f32 %v1310, %v1406
    %v1408 = vpop.f32.mrb[0].mxu0
    %v1409 = vpop.f32.mrb[0].mxu0
    %v1410 = vadd.f32 %v1313, %v1409
    %v1411 = vpop.f32.mrb[0].mxu0
    %1412 = vdwg.mxu0
    %v1413 = vmax.f32 %v1351, 0.0
    %v1414 = vmax.f32 %v1354, 0.0
    %v1415 = vmax.f32 %v1359, 0.0
    %v1416 = vmax.f32 %v1362, 0.0
    %v1417 = vmax.f32 %v1367, 0.0
    %v1418 = vmax.f32 %v1370, 0.0
    %v1419 = vmax.f32 %v1375, 0.0
    %v1420 = vmax.f32 %v1378, 0.0
    %v1421 = vmax.f32 %v1383, 0.0
    %v1422 = vmax.f32 %v1386, 0.0
    %v1423 = vmax.f32 %v1391, 0.0
    %v1424 = vmax.f32 %v1394, 0.0
    %v1425 = vmax.f32 %v1399, 0.0
    %v1426 = vmax.f32 %v1402, 0.0
    %v1427 = vmax.f32 %v1407, 0.0
    %v1428 = vmax.f32 %v1410, 0.0
    %v1429 = vpack.c.bf16 %v1414, %v1413
    %v1430 = vpack.c.bf16 %v1416, %v1415
    %v1431 = vpack.c.bf16 %v1418, %v1417
    %v1432 = vpack.c.bf16 %v1420, %v1419
    %v1433 = vpack.c.bf16 %v1422, %v1421
    %v1434 = vpack.c.bf16 %v1424, %v1423
    %v1435 = vpack.c.bf16 %v1426, %v1425
    %v1436 = vpack.c.bf16 %v1428, %v1427
    %v1437 = vld [vmem:[#allocation8] sm:$0xff]
    %v1438 = vld [vmem:[#allocation8 + $0x8] sm:$0xff]
    %v1439 = vld [vmem:[#allocation8 + $0x10] sm:$0xff]
    %v1440 = vld [vmem:[#allocation8 + $0x18] sm:$0xff]
    %v1441 = vld [vmem:[#allocation8 + $0x20] sm:$0xff]
    %v1442 = vld [vmem:[#allocation8 + $0x28] sm:$0xff]
    %v1443 = vld [vmem:[#allocation8 + $0x30] sm:$0xff]
    %v1444 = vld [vmem:[#allocation8 + $0x38] sm:$0xff]
    %v1445 = vld [vmem:[#allocation8 + $0x40] sm:$0xff]
    %v1446 = vld [vmem:[#allocation8 + $0x48] sm:$0xff]
    %v1447 = vld [vmem:[#allocation8 + $0x50] sm:$0xff]
    %v1448 = vld [vmem:[#allocation8 + $0x58] sm:$0xff]
    %v1449 = vld [vmem:[#allocation8 + $0x60] sm:$0xff]
    %v1450 = vld [vmem:[#allocation8 + $0x68] sm:$0xff]
    %v1451 = vld [vmem:[#allocation8 + $0x70] sm:$0xff]
    %v1452 = vld [vmem:[#allocation8 + $0x78] sm:$0xff]
    %v1453 = vld [vmem:[%s5] sm:$0x3]
    %v1455 = vlaneseq
    %v1456 = vshrl.u32 %v1455, 7
    %v1457 = vsub.s32 0, %v1456
    %v1458 = vrot.slane %v1453, %v1457
    %v1459 = vlaneseq
    %v1460 = vshrl.u32 %v1459, 7
    %v1461 = vsub.s32 1, %v1460
    %v1462 = vrot.slane %v1453, %v1461
    %v1481 = vunpack.c.l.b16 %v1437
    %v1482 = vunpack.c.h.b16 %v1437
    %v1483 = vunpack.c.l.b16 %v1438
    %v1484 = vunpack.c.h.b16 %v1438
    %v1485 = vunpack.c.l.b16 %v1439
    %v1486 = vunpack.c.h.b16 %v1439
    %v1487 = vunpack.c.l.b16 %v1440
    %v1488 = vunpack.c.h.b16 %v1440
    %v1489 = vunpack.c.l.b16 %v1441
    %v1490 = vunpack.c.h.b16 %v1441
    %v1491 = vunpack.c.l.b16 %v1442
    %v1492 = vunpack.c.h.b16 %v1442
    %v1493 = vunpack.c.l.b16 %v1443
    %v1494 = vunpack.c.h.b16 %v1443
    %v1495 = vunpack.c.l.b16 %v1444
    %v1496 = vunpack.c.h.b16 %v1444
    %v1497 = vunpack.c.l.b16 %v1445
    %v1498 = vunpack.c.h.b16 %v1445
    %v1499 = vunpack.c.l.b16 %v1446
    %v1500 = vunpack.c.h.b16 %v1446
    %v1501 = vunpack.c.l.b16 %v1447
    %v1502 = vunpack.c.h.b16 %v1447
    %v1503 = vunpack.c.l.b16 %v1448
    %v1504 = vunpack.c.h.b16 %v1448
    %v1505 = vunpack.c.l.b16 %v1449
    %v1506 = vunpack.c.h.b16 %v1449
    %v1507 = vunpack.c.l.b16 %v1450
    %v1508 = vunpack.c.h.b16 %v1450
    %v1509 = vunpack.c.l.b16 %v1451
    %v1510 = vunpack.c.h.b16 %v1451
    %v1511 = vunpack.c.l.b16 %v1452
    %v1512 = vunpack.c.h.b16 %v1452
    %v1513 = vpack.c.b16 %v1483, %v1481
    %v1514 = vpack.c.b16 %v1484, %v1482
    %v1515 = vpack.c.b16 %v1487, %v1485
    %v1516 = vpack.c.b16 %v1488, %v1486
    %v1517 = vpack.c.b16 %v1491, %v1489
    %v1518 = vpack.c.b16 %v1492, %v1490
    %v1519 = vpack.c.b16 %v1495, %v1493
    %v1520 = vpack.c.b16 %v1496, %v1494
    %v1521 = vpack.c.b16 %v1499, %v1497
    %v1522 = vpack.c.b16 %v1500, %v1498
    %v1523 = vpack.c.b16 %v1503, %v1501
    %v1524 = vpack.c.b16 %v1504, %v1502
    %v1525 = vpack.c.b16 %v1507, %v1505
    %v1526 = vpack.c.b16 %v1508, %v1506
    %v1527 = vpack.c.b16 %v1511, %v1509
    %v1528 = vpack.c.b16 %v1512, %v1510
    %1545 = vmatprep.subr.bf16.mxu0 %v1514
    %1546 = vmatpush1.bf16.msra.mxu0 %v1513
    %1547 = vmatprep.subr.bf16.mxu0 %v1516
    %1548 = vmatpush1.bf16.msra.mxu0 %v1515
    %1549 = vmatprep.subr.bf16.mxu0 %v1518
    %1550 = vmatpush1.bf16.msra.mxu0 %v1517
    %1551 = vmatprep.subr.bf16.mxu0 %v1520
    %1552 = vmatpush1.bf16.msra.mxu0 %v1519
    %1553 = vmatprep.subr.bf16.mxu0 %v1522
    %1554 = vmatpush1.bf16.msra.mxu0 %v1521
    %1555 = vmatprep.subr.bf16.mxu0 %v1524
    %1556 = vmatpush1.bf16.msra.mxu0 %v1523
    %1557 = vmatprep.subr.bf16.mxu0 %v1526
    %1558 = vmatpush1.bf16.msra.mxu0 %v1525
    %1559 = vmatprep.subr.bf16.mxu0 %v1528
    %1560 = vmatpush1.bf16.msra.mxu0 %v1527
    %1561 = vmatprep.subr.bf16.mxu0 0
    %1562 = vmatpush1.bf16.msra.mxu0 0
    %1563 = vmatprep.subr.bf16.mxu0 0
    %1564 = vmatpush1.bf16.msra.mxu0 0
    %1565 = vmatprep.subr.bf16.mxu0 0
    %1566 = vmatpush1.bf16.msra.mxu0 0
    %1567 = vmatprep.subr.bf16.mxu0 0
    %1568 = vmatpush1.bf16.msra.mxu0 0
    %1569 = vmatprep.subr.bf16.mxu0 0
    %1570 = vmatpush1.bf16.msra.mxu0 0
    %1571 = vmatprep.subr.bf16.mxu0 0
    %1572 = vmatpush1.bf16.msra.mxu0 0
    %1573 = vmatprep.subr.bf16.mxu0 0
    %1574 = vmatpush1.bf16.msra.mxu0 0
    %1575 = vmatprep.subr.bf16.mxu0 0
    %1576 = vmatpush1.bf16.msra.mxu0 0
    %1577 = vmatprep.mubr.bf16.mxu0 0
    %1578 = vmatmul.mubr.bf16.gmra.mrb[0].mxu0 %v1429
    %v1579 = vpop.f32.mrb[0].mxu0
    %v1580 = vadd.f32 %v1458, %v1579
    %v1581 = vpop.f32.mrb[0].mxu0
    %v1582 = vadd.f32 %v1462, %v1581
    %v1583 = vpop.f32.mrb[0].mxu0
    %v1584 = vadd.f32 %v1458, %v1583
    %v1585 = vpop.f32.mrb[0].mxu0
    %v1586 = vadd.f32 %v1462, %v1585
    %1587 = vmatprep.mubr.bf16.mxu0 0
    %1588 = vmatmul.mubr.bf16.gmra.mrb[0].mxu0 %v1430
    %v1589 = vpop.f32.mrb[0].mxu0
    %v1590 = vadd.f32 %v1458, %v1589
    %v1591 = vpop.f32.mrb[0].mxu0
    %v1592 = vadd.f32 %v1462, %v1591
    %v1593 = vpop.f32.mrb[0].mxu0
    %v1594 = vadd.f32 %v1458, %v1593
    %v1595 = vpop.f32.mrb[0].mxu0
    %v1596 = vadd.f32 %v1462, %v1595
    %1597 = vmatprep.mubr.bf16.mxu0 0
    %1598 = vmatmul.mubr.bf16.gmra.mrb[0].mxu0 %v1431
    %v1599 = vpop.f32.mrb[0].mxu0
    %v1600 = vadd.f32 %v1458, %v1599
    %v1601 = vpop.f32.mrb[0].mxu0
    %v1602 = vadd.f32 %v1462, %v1601
    %v1603 = vpop.f32.mrb[0].mxu0
    %v1604 = vadd.f32 %v1458, %v1603
    %v1605 = vpop.f32.mrb[0].mxu0
    %v1606 = vadd.f32 %v1462, %v1605
    %1607 = vmatprep.mubr.bf16.mxu0 0
    %1608 = vmatmul.mubr.bf16.gmra.mrb[0].mxu0 %v1432
    %v1609 = vpop.f32.mrb[0].mxu0
    %v1610 = vadd.f32 %v1458, %v1609
    %v1611 = vpop.f32.mrb[0].mxu0
    %v1612 = vadd.f32 %v1462, %v1611
    %v1613 = vpop.f32.mrb[0].mxu0
    %v1614 = vadd.f32 %v1458, %v1613
    %v1615 = vpop.f32.mrb[0].mxu0
    %v1616 = vadd.f32 %v1462, %v1615
    %1617 = vmatprep.mubr.bf16.mxu0 0
    %1618 = vmatmul.mubr.bf16.gmra.mrb[0].mxu0 %v1433
    %v1619 = vpop.f32.mrb[0].mxu0
    %v1620 = vadd.f32 %v1458, %v1619
    %v1621 = vpop.f32.mrb[0].mxu0
    %v1622 = vadd.f32 %v1462, %v1621
    %v1623 = vpop.f32.mrb[0].mxu0
    %v1624 = vadd.f32 %v1458, %v1623
    %v1625 = vpop.f32.mrb[0].mxu0
    %v1626 = vadd.f32 %v1462, %v1625
    %1627 = vmatprep.mubr.bf16.mxu0 0
    %1628 = vmatmul.mubr.bf16.gmra.mrb[0].mxu0 %v1434
    %v1629 = vpop.f32.mrb[0].mxu0
    %v1630 = vadd.f32 %v1458, %v1629
    %v1631 = vpop.f32.mrb[0].mxu0
    %v1632 = vadd.f32 %v1462, %v1631
    %v1633 = vpop.f32.mrb[0].mxu0
    %v1634 = vadd.f32 %v1458, %v1633
    %v1635 = vpop.f32.mrb[0].mxu0
    %v1636 = vadd.f32 %v1462, %v1635
    %1637 = vmatprep.mubr.bf16.mxu0 0
    %1638 = vmatmul.mubr.bf16.gmra.mrb[0].mxu0 %v1435
    %v1639 = vpop.f32.mrb[0].mxu0
    %v1640 = vadd.f32 %v1458, %v1639
    %v1641 = vpop.f32.mrb[0].mxu0
    %v1642 = vadd.f32 %v1462, %v1641
    %v1643 = vpop.f32.mrb[0].mxu0
    %v1644 = vadd.f32 %v1458, %v1643
    %v1645 = vpop.f32.mrb[0].mxu0
    %v1646 = vadd.f32 %v1462, %v1645
    %1647 = vmatprep.mubr.bf16.mxu0 0
    %1648 = vmatmul.mubr.bf16.gmra.mrb[0].mxu0 %v1436
    %v1649 = vpop.f32.mrb[0].mxu0
    %v1650 = vadd.f32 %v1458, %v1649
    %v1651 = vpop.f32.mrb[0].mxu0
    %v1652 = vadd.f32 %v1462, %v1651
    %v1653 = vpop.f32.mrb[0].mxu0
    %v1654 = vadd.f32 %v1458, %v1653
    %v1655 = vpop.f32.mrb[0].mxu0
    %v1656 = vadd.f32 %v1462, %v1655
    %1657 = vdwg.mxu0
    %1658 = vst [vmem:[#allocation13] sm:$0xff] %v1580
    %1659 = vst [vmem:[#allocation13 + $0x8] sm:$0xff] %v1582
    %1660 = vst [vmem:[#allocation13 + $0x10] sm:$0xff] %v1584
    %1661 = vst [vmem:[#allocation13 + $0x18] sm:$0xff] %v1586
    %1662 = vst [vmem:[#allocation13 + $0x20] sm:$0xff] %v1590
    %1663 = vst [vmem:[#allocation13 + $0x28] sm:$0xff] %v1592
    %1664 = vst [vmem:[#allocation13 + $0x30] sm:$0xff] %v1594
    %1665 = vst [vmem:[#allocation13 + $0x38] sm:$0xff] %v1596
    %1666 = vst [vmem:[#allocation13 + $0x40] sm:$0xff] %v1600
    %1667 = vst [vmem:[#allocation13 + $0x48] sm:$0xff] %v1602
    %1668 = vst [vmem:[#allocation13 + $0x50] sm:$0xff] %v1604
    %1669 = vst [vmem:[#allocation13 + $0x58] sm:$0xff] %v1606
    %1670 = vst [vmem:[#allocation13 + $0x60] sm:$0xff] %v1610
    %1671 = vst [vmem:[#allocation13 + $0x68] sm:$0xff] %v1612
    %1672 = vst [vmem:[#allocation13 + $0x70] sm:$0xff] %v1614
    %1673 = vst [vmem:[#allocation13 + $0x78] sm:$0xff] %v1616
    %1674 = vst [vmem:[#allocation13 + $0x80] sm:$0xff] %v1620
    %1675 = vst [vmem:[#allocation13 + $0x88] sm:$0xff] %v1622
    %1676 = vst [vmem:[#allocation13 + $0x90] sm:$0xff] %v1624
    %1677 = vst [vmem:[#allocation13 + $0x98] sm:$0xff] %v1626
    %1678 = vst [vmem:[#allocation13 + $0xa0] sm:$0xff] %v1630
    %1679 = vst [vmem:[#allocation13 + $0xa8] sm:$0xff] %v1632
    %1680 = vst [vmem:[#allocation13 + $0xb0] sm:$0xff] %v1634
    %1681 = vst [vmem:[#allocation13 + $0xb8] sm:$0xff] %v1636
    %1682 = vst [vmem:[#allocation13 + $0xc0] sm:$0xff] %v1640
    %1683 = vst [vmem:[#allocation13 + $0xc8] sm:$0xff] %v1642
    %1684 = vst [vmem:[#allocation13 + $0xd0] sm:$0xff] %v1644
    %1685 = vst [vmem:[#allocation13 + $0xd8] sm:$0xff] %v1646
    %1686 = vst [vmem:[#allocation13 + $0xe0] sm:$0xff] %v1650
    %1687 = vst [vmem:[#allocation13 + $0xe8] sm:$0xff] %v1652
    %1688 = vst [vmem:[#allocation13 + $0xf0] sm:$0xff] %v1654
    %1689 = vst [vmem:[#allocation13 + $0xf8] sm:$0xff] %v1656
    %v1690 = vmul.f32 %v1582, 0.5
    %v1691 = vmul.f32 %v1586, 0.5
    %v1692 = vmul.f32 %v1592, 0.5
    %v1693 = vmul.f32 %v1596, 0.5
    %v1694 = vmul.f32 %v1602, 0.5
    %v1695 = vmul.f32 %v1606, 0.5
    %v1696 = vmul.f32 %v1612, 0.5
    %v1697 = vmul.f32 %v1616, 0.5
    %v1698 = vmul.f32 %v1622, 0.5
    %v1699 = vmul.f32 %v1626, 0.5
    %v1700 = vmul.f32 %v1632, 0.5
    %v1701 = vmul.f32 %v1636, 0.5
    %v1702 = vmul.f32 %v1642, 0.5
    %v1703 = vmul.f32 %v1646, 0.5
    %v1704 = vmul.f32 %v1652, 0.5
    %v1705 = vmul.f32 %v1656, 0.5
    %v1706 = vmul.f32 %v1690, 1.442695
    %v1707 = vpow.pop %v1706
    %v1708 = vmul.f32 %v1691, 1.442695
    %v1709 = vpow.pop %v1708
    %v1710 = vmul.f32 %v1692, 1.442695
    %v1711 = vpow.pop %v1710
    %v1712 = vmul.f32 %v1693, 1.442695
    %v1713 = vpow.pop %v1712
    %v1714 = vmul.f32 %v1694, 1.442695
    %v1715 = vpow.pop %v1714
    %v1716 = vmul.f32 %v1695, 1.442695
    %v1717 = vpow.pop %v1716
    %v1718 = vmul.f32 %v1696, 1.442695
    %v1719 = vpow.pop %v1718
    %v1720 = vmul.f32 %v1697, 1.442695
    %v1721 = vpow.pop %v1720
    %v1722 = vmul.f32 %v1698, 1.442695
    %v1723 = vpow.pop %v1722
    %v1724 = vmul.f32 %v1699, 1.442695
    %v1725 = vpow.pop %v1724
    %v1726 = vmul.f32 %v1700, 1.442695
    %v1727 = vpow.pop %v1726
    %v1728 = vmul.f32 %v1701, 1.442695
    %v1729 = vpow.pop %v1728
    %v1730 = vmul.f32 %v1702, 1.442695
    %v1731 = vpow.pop %v1730
    %v1732 = vmul.f32 %v1703, 1.442695
    %v1733 = vpow.pop %v1732
    %v1734 = vmul.f32 %v1704, 1.442695
    %v1735 = vpow.pop %v1734
    %v1736 = vmul.f32 %v1705, 1.442695
    %v1737 = vpow.pop %v1736
    %v1738 = vld [vmem:[#allocation5] sm:$0xff]
    %v1739 = vld [vmem:[#allocation5 + $0x8] sm:$0xff]
    %v1740 = vld [vmem:[#allocation5 + $0x10] sm:$0xff]
    %v1741 = vld [vmem:[#allocation5 + $0x18] sm:$0xff]
    %v1742 = vld [vmem:[#allocation5 + $0x20] sm:$0xff]
    %v1743 = vld [vmem:[#allocation5 + $0x28] sm:$0xff]
    %v1744 = vld [vmem:[#allocation5 + $0x30] sm:$0xff]
    %v1745 = vld [vmem:[#allocation5 + $0x38] sm:$0xff]
    %v1746 = vld [vmem:[#allocation5 + $0x40] sm:$0xff]
    %v1747 = vld [vmem:[#allocation5 + $0x48] sm:$0xff]
    %v1748 = vld [vmem:[#allocation5 + $0x50] sm:$0xff]
    %v1749 = vld [vmem:[#allocation5 + $0x58] sm:$0xff]
    %v1750 = vld [vmem:[#allocation5 + $0x60] sm:$0xff]
    %v1751 = vld [vmem:[#allocation5 + $0x68] sm:$0xff]
    %v1752 = vld [vmem:[#allocation5 + $0x70] sm:$0xff]
    %v1753 = vld [vmem:[#allocation5 + $0x78] sm:$0xff]
    %v1754 = vmul.f32 %v1707, %v1738
    %v1755 = vmul.f32 %v1709, %v1739
    %v1756 = vmul.f32 %v1711, %v1740
    %v1757 = vmul.f32 %v1713, %v1741
    %v1758 = vmul.f32 %v1715, %v1742
    %v1759 = vmul.f32 %v1717, %v1743
    %v1760 = vmul.f32 %v1719, %v1744
    %v1761 = vmul.f32 %v1721, %v1745
    %v1762 = vmul.f32 %v1723, %v1746
    %v1763 = vmul.f32 %v1725, %v1747
    %v1764 = vmul.f32 %v1727, %v1748
    %v1765 = vmul.f32 %v1729, %v1749
    %v1766 = vmul.f32 %v1731, %v1750
    %v1767 = vmul.f32 %v1733, %v1751
    %v1768 = vmul.f32 %v1735, %v1752
    %v1769 = vmul.f32 %v1737, %v1753
    %v1770 = vadd.f32 %v1580, %v1754
    %v1771 = vadd.f32 %v1584, %v1755
    %v1772 = vadd.f32 %v1590, %v1756
    %v1773 = vadd.f32 %v1594, %v1757
    %v1774 = vadd.f32 %v1600, %v1758
    %v1775 = vadd.f32 %v1604, %v1759
    %v1776 = vadd.f32 %v1610, %v1760
    %v1777 = vadd.f32 %v1614, %v1761
    %v1778 = vadd.f32 %v1620, %v1762
    %v1779 = vadd.f32 %v1624, %v1763
    %v1780 = vadd.f32 %v1630, %v1764
    %v1781 = vadd.f32 %v1634, %v1765
    %v1782 = vadd.f32 %v1640, %v1766
    %v1783 = vadd.f32 %v1644, %v1767
    %v1784 = vadd.f32 %v1650, %v1768
    %v1785 = vadd.f32 %v1654, %v1769
    %v1786 = vpack.c.bf16 %v1771, %v1770
    %v1787 = vpack.c.bf16 %v1773, %v1772
    %v1788 = vpack.c.bf16 %v1775, %v1774
    %v1789 = vpack.c.bf16 %v1777, %v1776
    %v1790 = vpack.c.bf16 %v1779, %v1778
    %v1791 = vpack.c.bf16 %v1781, %v1780
    %v1792 = vpack.c.bf16 %v1783, %v1782
    %v1793 = vpack.c.bf16 %v1785, %v1784
    %v1794 = vld [vmem:[#allocation10] sm:$0xf]
    %v1795 = vld [vmem:[#allocation10 + $0x4] sm:$0xf]
    %v1796 = vld [vmem:[#allocation10 + $0x8] sm:$0xf]
    %v1797 = vld [vmem:[#allocation10 + $0xc] sm:$0xf]
    %v1798 = vld [vmem:[#allocation10 + $0x10] sm:$0xf]
    %v1799 = vld [vmem:[#allocation10 + $0x14] sm:$0xf]
    %v1800 = vld [vmem:[#allocation10 + $0x18] sm:$0xf]
    %v1801 = vld [vmem:[#allocation10 + $0x1c] sm:$0xf]
    %v1802 = vld [vmem:[#allocation10 + $0x20] sm:$0xf]
    %v1803 = vld [vmem:[#allocation10 + $0x24] sm:$0xf]
    %v1804 = vld [vmem:[#allocation10 + $0x28] sm:$0xf]
    %v1805 = vld [vmem:[#allocation10 + $0x2c] sm:$0xf]
    %v1806 = vld [vmem:[#allocation10 + $0x30] sm:$0xf]
    %v1807 = vld [vmem:[#allocation10 + $0x34] sm:$0xf]
    %v1808 = vld [vmem:[#allocation10 + $0x38] sm:$0xf]
    %v1809 = vld [vmem:[#allocation10 + $0x3c] sm:$0xf]
    %v1810 = vld [vmem:[%s7] sm:$0x1]
    %v1812 = vlaneseq
    %v1813 = vshrl.u32 %v1812, 7
    %v1814 = vsub.s32 0, %v1813
    %v1815 = vrot.slane %v1810, %v1814
    %v1833 = vunpack.c.l.b16 %v1794
    %v1834 = vunpack.c.l.b16 %v1795
    %v1835 = vunpack.c.l.b16 %v1796
    %v1836 = vunpack.c.l.b16 %v1797
    %v1837 = vunpack.c.l.b16 %v1798
    %v1838 = vunpack.c.l.b16 %v1799
    %v1839 = vunpack.c.l.b16 %v1800
    %v1840 = vunpack.c.l.b16 %v1801
    %v1841 = vunpack.c.l.b16 %v1802
    %v1842 = vunpack.c.l.b16 %v1803
    %v1843 = vunpack.c.l.b16 %v1804
    %v1844 = vunpack.c.l.b16 %v1805
    %v1845 = vunpack.c.l.b16 %v1806
    %v1846 = vunpack.c.l.b16 %v1807
    %v1847 = vunpack.c.l.b16 %v1808
    %v1848 = vunpack.c.l.b16 %v1809
    %v1849 = vpack.c.b16 %v1834, %v1833
    %v1850 = vpack.c.b16 %v1836, %v1835
    %v1851 = vpack.c.b16 %v1838, %v1837
    %v1852 = vpack.c.b16 %v1840, %v1839
    %v1853 = vpack.c.b16 %v1842, %v1841
    %v1854 = vpack.c.b16 %v1844, %v1843
    %v1855 = vpack.c.b16 %v1846, %v1845
    %v1856 = vpack.c.b16 %v1848, %v1847
    %1865 = vmatprep.subr.bf16.mxu0 0
    %1866 = vmatpush1.bf16.msra.mxu0 %v1849
    %1867 = vmatprep.subr.bf16.mxu0 0
    %1868 = vmatpush1.bf16.msra.mxu0 %v1850
    %1869 = vmatprep.subr.bf16.mxu0 0
    %1870 = vmatpush1.bf16.msra.mxu0 %v1851
    %1871 = vmatprep.subr.bf16.mxu0 0
    %1872 = vmatpush1.bf16.msra.mxu0 %v1852
    %1873 = vmatprep.subr.bf16.mxu0 0
    %1874 = vmatpush1.bf16.msra.mxu0 %v1853
    %1875 = vmatprep.subr.bf16.mxu0 0
    %1876 = vmatpush1.bf16.msra.mxu0 %v1854
    %1877 = vmatprep.subr.bf16.mxu0 0
    %1878 = vmatpush1.bf16.msra.mxu0 %v1855
    %1879 = vmatprep.subr.bf16.mxu0 0
    %1880 = vmatpush1.bf16.msra.mxu0 %v1856
    %1881 = vmatprep.subr.bf16.mxu0 0
    %1882 = vmatpush1.bf16.msra.mxu0 0
    %1883 = vmatprep.subr.bf16.mxu0 0
    %1884 = vmatpush1.bf16.msra.mxu0 0
    %1885 = vmatprep.subr.bf16.mxu0 0
    %1886 = vmatpush1.bf16.msra.mxu0 0
    %1887 = vmatprep.subr.bf16.mxu0 0
    %1888 = vmatpush1.bf16.msra.mxu0 0
    %1889 = vmatprep.subr.bf16.mxu0 0
    %1890 = vmatpush1.bf16.msra.mxu0 0
    %1891 = vmatprep.subr.bf16.mxu0 0
    %1892 = vmatpush1.bf16.msra.mxu0 0
    %1893 = vmatprep.subr.bf16.mxu0 0
    %1894 = vmatpush1.bf16.msra.mxu0 0
    %1895 = vmatprep.subr.bf16.mxu0 0
    %1896 = vmatpush1.bf16.msra.mxu0 0
    %1897 = vmatprep.mubr.bf16.mxu0 0
    %1898 = vmatmul.mubr.bf16.gmra.mrb[0].mxu0 %v1786
    %v1899 = vpop.f32.mrb[0].mxu0
    %v1900 = vadd.f32 %v1815, %v1899
    %v1901 = vpop.f32.mrb[0].mxu0
    %v1902 = vpop.f32.mrb[0].mxu0
    %v1903 = vadd.f32 %v1815, %v1902
    %v1904 = vpop.f32.mrb[0].mxu0
    %1905 = vmatprep.mubr.bf16.mxu0 0
    %1906 = vmatmul.mubr.bf16.gmra.mrb[0].mxu0 %v1787
    %v1907 = vpop.f32.mrb[0].mxu0
    %v1908 = vadd.f32 %v1815, %v1907
    %v1909 = vpop.f32.mrb[0].mxu0
    %v1910 = vpop.f32.mrb[0].mxu0
    %v1911 = vadd.f32 %v1815, %v1910
    %v1912 = vpop.f32.mrb[0].mxu0
    %1913 = vmatprep.mubr.bf16.mxu0 0
    %1914 = vmatmul.mubr.bf16.gmra.mrb[0].mxu0 %v1788
    %v1915 = vpop.f32.mrb[0].mxu0
    %v1916 = vadd.f32 %v1815, %v1915
    %v1917 = vpop.f32.mrb[0].mxu0
    %v1918 = vpop.f32.mrb[0].mxu0
    %v1919 = vadd.f32 %v1815, %v1918
    %v1920 = vpop.f32.mrb[0].mxu0
    %1921 = vmatprep.mubr.bf16.mxu0 0
    %1922 = vmatmul.mubr.bf16.gmra.mrb[0].mxu0 %v1789
    %v1923 = vpop.f32.mrb[0].mxu0
    %v1924 = vadd.f32 %v1815, %v1923
    %v1925 = vpop.f32.mrb[0].mxu0
    %v1926 = vpop.f32.mrb[0].mxu0
    %v1927 = vadd.f32 %v1815, %v1926
    %v1928 = vpop.f32.mrb[0].mxu0
    %1929 = vmatprep.mubr.bf16.mxu0 0
    %1930 = vmatmul.mubr.bf16.gmra.mrb[0].mxu0 %v1790
    %v1931 = vpop.f32.mrb[0].mxu0
    %v1932 = vadd.f32 %v1815, %v1931
    %v1933 = vpop.f32.mrb[0].mxu0
    %v1934 = vpop.f32.mrb[0].mxu0
    %v1935 = vadd.f32 %v1815, %v1934
    %v1936 = vpop.f32.mrb[0].mxu0
    %1937 = vmatprep.mubr.bf16.mxu0 0
    %1938 = vmatmul.mubr.bf16.gmra.mrb[0].mxu0 %v1791
    %v1939 = vpop.f32.mrb[0].mxu0
    %v1940 = vadd.f32 %v1815, %v1939
    %v1941 = vpop.f32.mrb[0].mxu0
    %v1942 = vpop.f32.mrb[0].mxu0
    %v1943 = vadd.f32 %v1815, %v1942
    %v1944 = vpop.f32.mrb[0].mxu0
    %1945 = vmatprep.mubr.bf16.mxu0 0
    %1946 = vmatmul.mubr.bf16.gmra.mrb[0].mxu0 %v1792
    %v1947 = vpop.f32.mrb[0].mxu0
    %v1948 = vadd.f32 %v1815, %v1947
    %v1949 = vpop.f32.mrb[0].mxu0
    %v1950 = vpop.f32.mrb[0].mxu0
    %v1951 = vadd.f32 %v1815, %v1950
    %v1952 = vpop.f32.mrb[0].mxu0
    %1953 = vmatprep.mubr.bf16.mxu0 0
    %1954 = vmatmul.mubr.bf16.gmra.mrb[0].mxu0 %v1793
    %v1955 = vpop.f32.mrb[0].mxu0
    %v1956 = vadd.f32 %v1815, %v1955
    %v1957 = vpop.f32.mrb[0].mxu0
    %v1958 = vpop.f32.mrb[0].mxu0
    %v1959 = vadd.f32 %v1815, %v1958
    %v1960 = vpop.f32.mrb[0].mxu0
    %1961 = vdwg.mxu0
    %v1962 = vmax.f32 %v1900, 0.0
    %v1963 = vmax.f32 %v1903, 0.0
    %v1964 = vmax.f32 %v1908, 0.0
    %v1965 = vmax.f32 %v1911, 0.0
    %v1966 = vmax.f32 %v1916, 0.0
    %v1967 = vmax.f32 %v1919, 0.0
    %v1968 = vmax.f32 %v1924, 0.0
    %v1969 = vmax.f32 %v1927, 0.0
    %v1970 = vmax.f32 %v1932, 0.0
    %v1971 = vmax.f32 %v1935, 0.0
    %v1972 = vmax.f32 %v1940, 0.0
    %v1973 = vmax.f32 %v1943, 0.0
    %v1974 = vmax.f32 %v1948, 0.0
    %v1975 = vmax.f32 %v1951, 0.0
    %v1976 = vmax.f32 %v1956, 0.0
    %v1977 = vmax.f32 %v1959, 0.0
    %v1978 = vpack.c.bf16 %v1963, %v1962
    %v1979 = vpack.c.bf16 %v1965, %v1964
    %v1980 = vpack.c.bf16 %v1967, %v1966
    %v1981 = vpack.c.bf16 %v1969, %v1968
    %v1982 = vpack.c.bf16 %v1971, %v1970
    %v1983 = vpack.c.bf16 %v1973, %v1972
    %v1984 = vpack.c.bf16 %v1975, %v1974
    %v1985 = vpack.c.bf16 %v1977, %v1976
    %v1986 = vld [vmem:[#allocation11] sm:$0xff]
    %v1987 = vld [vmem:[#allocation11 + $0x8] sm:$0xff]
    %v1988 = vld [vmem:[#allocation11 + $0x10] sm:$0xff]
    %v1989 = vld [vmem:[#allocation11 + $0x18] sm:$0xff]
    %v1990 = vld [vmem:[#allocation11 + $0x20] sm:$0xff]
    %v1991 = vld [vmem:[#allocation11 + $0x28] sm:$0xff]
    %v1992 = vld [vmem:[#allocation11 + $0x30] sm:$0xff]
    %v1993 = vld [vmem:[#allocation11 + $0x38] sm:$0xff]
    %v1994 = vld [vmem:[#allocation11 + $0x40] sm:$0xff]
    %v1995 = vld [vmem:[#allocation11 + $0x48] sm:$0xff]
    %v1996 = vld [vmem:[#allocation11 + $0x50] sm:$0xff]
    %v1997 = vld [vmem:[#allocation11 + $0x58] sm:$0xff]
    %v1998 = vld [vmem:[#allocation11 + $0x60] sm:$0xff]
    %v1999 = vld [vmem:[#allocation11 + $0x68] sm:$0xff]
    %v2000 = vld [vmem:[#allocation11 + $0x70] sm:$0xff]
    %v2001 = vld [vmem:[#allocation11 + $0x78] sm:$0xff]
    %v2002 = vld [vmem:[#allocation11 + $0x80] sm:$0xff]
    %v2003 = vld [vmem:[#allocation11 + $0x88] sm:$0xff]
    %v2004 = vld [vmem:[#allocation11 + $0x90] sm:$0xff]
    %v2005 = vld [vmem:[#allocation11 + $0x98] sm:$0xff]
    %v2006 = vld [vmem:[#allocation11 + $0xa0] sm:$0xff]
    %v2007 = vld [vmem:[#allocation11 + $0xa8] sm:$0xff]
    %v2008 = vld [vmem:[#allocation11 + $0xb0] sm:$0xff]
    %v2009 = vld [vmem:[#allocation11 + $0xb8] sm:$0xff]
    %v2010 = vld [vmem:[#allocation11 + $0xc0] sm:$0xff]
    %v2011 = vld [vmem:[#allocation11 + $0xc8] sm:$0xff]
    %v2012 = vld [vmem:[#allocation11 + $0xd0] sm:$0xff]
    %v2013 = vld [vmem:[#allocation11 + $0xd8] sm:$0xff]
    %v2014 = vld [vmem:[#allocation11 + $0xe0] sm:$0xff]
    %v2015 = vld [vmem:[#allocation11 + $0xe8] sm:$0xff]
    %v2016 = vld [vmem:[#allocation11 + $0xf0] sm:$0xff]
    %v2017 = vld [vmem:[#allocation11 + $0xf8] sm:$0xff]
    %v2018 = vld [vmem:[#allocation11 + $0x100] sm:$0xff]
    %v2019 = vld [vmem:[#allocation11 + $0x108] sm:$0xff]
    %v2020 = vld [vmem:[#allocation11 + $0x110] sm:$0xff]
    %v2021 = vld [vmem:[#allocation11 + $0x118] sm:$0xff]
    %v2022 = vld [vmem:[#allocation11 + $0x120] sm:$0xff]
    %v2023 = vld [vmem:[#allocation11 + $0x128] sm:$0xff]
    %v2024 = vld [vmem:[#allocation11 + $0x130] sm:$0xff]
    %v2025 = vld [vmem:[#allocation11 + $0x138] sm:$0xff]
    %v2026 = vld [vmem:[#allocation11 + $0x140] sm:$0xff]
    %v2027 = vld [vmem:[#allocation11 + $0x148] sm:$0xff]
    %v2028 = vld [vmem:[#allocation11 + $0x150] sm:$0xff]
    %v2029 = vld [vmem:[#allocation11 + $0x158] sm:$0xff]
    %v2030 = vld [vmem:[#allocation11 + $0x160] sm:$0xff]
    %v2031 = vld [vmem:[#allocation11 + $0x168] sm:$0xff]
    %v2032 = vld [vmem:[#allocation11 + $0x170] sm:$0xff]
    %v2033 = vld [vmem:[#allocation11 + $0x178] sm:$0xff]
    %v2034 = vld [vmem:[#allocation11 + $0x180] sm:$0xff]
    %v2035 = vld [vmem:[#allocation11 + $0x188] sm:$0xff]
    %v2036 = vld [vmem:[#allocation11 + $0x190] sm:$0xff]
    %v2037 = vld [vmem:[#allocation11 + $0x198] sm:$0xff]
    %v2038 = vld [vmem:[#allocation11 + $0x1a0] sm:$0xff]
    %v2039 = vld [vmem:[#allocation11 + $0x1a8] sm:$0xff]
    %v2040 = vld [vmem:[#allocation11 + $0x1b0] sm:$0xff]
    %v2041 = vld [vmem:[#allocation11 + $0x1b8] sm:$0xff]
    %v2042 = vld [vmem:[#allocation11 + $0x1c0] sm:$0xff]
    %v2043 = vld [vmem:[#allocation11 + $0x1c8] sm:$0xff]
    %v2044 = vld [vmem:[#allocation11 + $0x1d0] sm:$0xff]
    %v2045 = vld [vmem:[#allocation11 + $0x1d8] sm:$0xff]
    %v2046 = vld [vmem:[#allocation11 + $0x1e0] sm:$0xff]
    %v2047 = vld [vmem:[#allocation11 + $0x1e8] sm:$0xff]
    %v2048 = vld [vmem:[#allocation11 + $0x1f0] sm:$0xff]
    %v2049 = vld [vmem:[#allocation11 + $0x1f8] sm:$0xff]
    %v2050 = vld [vmem:[%s9] sm:$0xff]
    %v2052 = vlaneseq
    %v2053 = vshrl.u32 %v2052, 7
    %v2054 = vsub.s32 0, %v2053
    %v2055 = vrot.slane %v2050, %v2054
    %v2056 = vlaneseq
    %v2057 = vshrl.u32 %v2056, 7
    %v2058 = vsub.s32 1, %v2057
    %v2059 = vrot.slane %v2050, %v2058
    %v2060 = vlaneseq
    %v2061 = vshrl.u32 %v2060, 7
    %v2062 = vsub.s32 2, %v2061
    %v2063 = vrot.slane %v2050, %v2062
    %v2064 = vlaneseq
    %v2065 = vshrl.u32 %v2064, 7
    %v2066 = vsub.s32 3, %v2065
    %v2067 = vrot.slane %v2050, %v2066
    %v2068 = vlaneseq
    %v2069 = vshrl.u32 %v2068, 7
    %v2070 = vsub.s32 4, %v2069
    %v2071 = vrot.slane %v2050, %v2070
    %v2072 = vlaneseq
    %v2073 = vshrl.u32 %v2072, 7
    %v2074 = vsub.s32 5, %v2073
    %v2075 = vrot.slane %v2050, %v2074
    %v2076 = vlaneseq
    %v2077 = vshrl.u32 %v2076, 7
    %v2078 = vsub.s32 6, %v2077
    %v2079 = vrot.slane %v2050, %v2078
    %v2080 = vlaneseq
    %v2081 = vshrl.u32 %v2080, 7
    %v2082 = vsub.s32 7, %v2081
    %v2083 = vrot.slane %v2050, %v2082
    %v2156 = vunpack.c.l.b16 %v1986
    %v2157 = vunpack.c.h.b16 %v1986
    %v2158 = vunpack.c.l.b16 %v1987
    %v2159 = vunpack.c.h.b16 %v1987
    %v2160 = vunpack.c.l.b16 %v1988
    %v2161 = vunpack.c.h.b16 %v1988
    %v2162 = vunpack.c.l.b16 %v1989
    %v2163 = vunpack.c.h.b16 %v1989
    %v2164 = vunpack.c.l.b16 %v1990
    %v2165 = vunpack.c.h.b16 %v1990
    %v2166 = vunpack.c.l.b16 %v1991
    %v2167 = vunpack.c.h.b16 %v1991
    %v2168 = vunpack.c.l.b16 %v1992
    %v2169 = vunpack.c.h.b16 %v1992
    %v2170 = vunpack.c.l.b16 %v1993
    %v2171 = vunpack.c.h.b16 %v1993
    %v2172 = vunpack.c.l.b16 %v1994
    %v2173 = vunpack.c.h.b16 %v1994
    %v2174 = vunpack.c.l.b16 %v1995
    %v2175 = vunpack.c.h.b16 %v1995
    %v2176 = vunpack.c.l.b16 %v1996
    %v2177 = vunpack.c.h.b16 %v1996
    %v2178 = vunpack.c.l.b16 %v1997
    %v2179 = vunpack.c.h.b16 %v1997
    %v2180 = vunpack.c.l.b16 %v1998
    %v2181 = vunpack.c.h.b16 %v1998
    %v2182 = vunpack.c.l.b16 %v1999
    %v2183 = vunpack.c.h.b16 %v1999
    %v2184 = vunpack.c.l.b16 %v2000
    %v2185 = vunpack.c.h.b16 %v2000
    %v2186 = vunpack.c.l.b16 %v2001
    %v2187 = vunpack.c.h.b16 %v2001
    %v2188 = vunpack.c.l.b16 %v2002
    %v2189 = vunpack.c.h.b16 %v2002
    %v2190 = vunpack.c.l.b16 %v2003
    %v2191 = vunpack.c.h.b16 %v2003
    %v2192 = vunpack.c.l.b16 %v2004
    %v2193 = vunpack.c.h.b16 %v2004
    %v2194 = vunpack.c.l.b16 %v2005
    %v2195 = vunpack.c.h.b16 %v2005
    %v2196 = vunpack.c.l.b16 %v2006
    %v2197 = vunpack.c.h.b16 %v2006
    %v2198 = vunpack.c.l.b16 %v2007
    %v2199 = vunpack.c.h.b16 %v2007
    %v2200 = vunpack.c.l.b16 %v2008
    %v2201 = vunpack.c.h.b16 %v2008
    %v2202 = vunpack.c.l.b16 %v2009
    %v2203 = vunpack.c.h.b16 %v2009
    %v2204 = vunpack.c.l.b16 %v2010
    %v2205 = vunpack.c.h.b16 %v2010
    %v2206 = vunpack.c.l.b16 %v2011
    %v2207 = vunpack.c.h.b16 %v2011
    %v2208 = vunpack.c.l.b16 %v2012
    %v2209 = vunpack.c.h.b16 %v2012
    %v2210 = vunpack.c.l.b16 %v2013
    %v2211 = vunpack.c.h.b16 %v2013
    %v2212 = vunpack.c.l.b16 %v2014
    %v2213 = vunpack.c.h.b16 %v2014
    %v2214 = vunpack.c.l.b16 %v2015
    %v2215 = vunpack.c.h.b16 %v2015
    %v2216 = vunpack.c.l.b16 %v2016
    %v2217 = vunpack.c.h.b16 %v2016
    %v2218 = vunpack.c.l.b16 %v2017
    %v2219 = vunpack.c.h.b16 %v2017
    %v2220 = vunpack.c.l.b16 %v2018
    %v2221 = vunpack.c.h.b16 %v2018
    %v2222 = vunpack.c.l.b16 %v2019
    %v2223 = vunpack.c.h.b16 %v2019
    %v2224 = vunpack.c.l.b16 %v2020
    %v2225 = vunpack.c.h.b16 %v2020
    %v2226 = vunpack.c.l.b16 %v2021
    %v2227 = vunpack.c.h.b16 %v2021
    %v2228 = vunpack.c.l.b16 %v2022
    %v2229 = vunpack.c.h.b16 %v2022
    %v2230 = vunpack.c.l.b16 %v2023
    %v2231 = vunpack.c.h.b16 %v2023
    %v2232 = vunpack.c.l.b16 %v2024
    %v2233 = vunpack.c.h.b16 %v2024
    %v2234 = vunpack.c.l.b16 %v2025
    %v2235 = vunpack.c.h.b16 %v2025
    %v2236 = vunpack.c.l.b16 %v2026
    %v2237 = vunpack.c.h.b16 %v2026
    %v2238 = vunpack.c.l.b16 %v2027
    %v2239 = vunpack.c.h.b16 %v2027
    %v2240 = vunpack.c.l.b16 %v2028
    %v2241 = vunpack.c.h.b16 %v2028
    %v2242 = vunpack.c.l.b16 %v2029
    %v2243 = vunpack.c.h.b16 %v2029
    %v2244 = vunpack.c.l.b16 %v2030
    %v2245 = vunpack.c.h.b16 %v2030
    %v2246 = vunpack.c.l.b16 %v2031
    %v2247 = vunpack.c.h.b16 %v2031
    %v2248 = vunpack.c.l.b16 %v2032
    %v2249 = vunpack.c.h.b16 %v2032
    %v2250 = vunpack.c.l.b16 %v2033
    %v2251 = vunpack.c.h.b16 %v2033
    %v2252 = vunpack.c.l.b16 %v2034
    %v2253 = vunpack.c.h.b16 %v2034
    %v2254 = vunpack.c.l.b16 %v2035
    %v2255 = vunpack.c.h.b16 %v2035
    %v2256 = vunpack.c.l.b16 %v2036
    %v2257 = vunpack.c.h.b16 %v2036
    %v2258 = vunpack.c.l.b16 %v2037
    %v2259 = vunpack.c.h.b16 %v2037
    %v2260 = vunpack.c.l.b16 %v2038
    %v2261 = vunpack.c.h.b16 %v2038
    %v2262 = vunpack.c.l.b16 %v2039
    %v2263 = vunpack.c.h.b16 %v2039
    %v2264 = vunpack.c.l.b16 %v2040
    %v2265 = vunpack.c.h.b16 %v2040
    %v2266 = vunpack.c.l.b16 %v2041
    %v2267 = vunpack.c.h.b16 %v2041
    %v2268 = vunpack.c.l.b16 %v2042
    %v2269 = vunpack.c.h.b16 %v2042
    %v2270 = vunpack.c.l.b16 %v2043
    %v2271 = vunpack.c.h.b16 %v2043
    %v2272 = vunpack.c.l.b16 %v2044
    %v2273 = vunpack.c.h.b16 %v2044
    %v2274 = vunpack.c.l.b16 %v2045
    %v2275 = vunpack.c.h.b16 %v2045
    %v2276 = vunpack.c.l.b16 %v2046
    %v2277 = vunpack.c.h.b16 %v2046
    %v2278 = vunpack.c.l.b16 %v2047
    %v2279 = vunpack.c.h.b16 %v2047
    %v2280 = vunpack.c.l.b16 %v2048
    %v2281 = vunpack.c.h.b16 %v2048
    %v2282 = vunpack.c.l.b16 %v2049
    %v2283 = vunpack.c.h.b16 %v2049
    %v2284 = vpack.c.b16 %v2164, %v2156
    %v2285 = vpack.c.b16 %v2165, %v2157
    %v2286 = vpack.c.b16 %v2166, %v2158
    %v2287 = vpack.c.b16 %v2167, %v2159
    %v2288 = vpack.c.b16 %v2168, %v2160
    %v2289 = vpack.c.b16 %v2169, %v2161
    %v2290 = vpack.c.b16 %v2170, %v2162
    %v2291 = vpack.c.b16 %v2171, %v2163
    %v2292 = vpack.c.b16 %v2180, %v2172
    %v2293 = vpack.c.b16 %v2181, %v2173
    %v2294 = vpack.c.b16 %v2182, %v2174
    %v2295 = vpack.c.b16 %v2183, %v2175
    %v2296 = vpack.c.b16 %v2184, %v2176
    %v2297 = vpack.c.b16 %v2185, %v2177
    %v2298 = vpack.c.b16 %v2186, %v2178
    %v2299 = vpack.c.b16 %v2187, %v2179
    %v2300 = vpack.c.b16 %v2196, %v2188
    %v2301 = vpack.c.b16 %v2197, %v2189
    %v2302 = vpack.c.b16 %v2198, %v2190
    %v2303 = vpack.c.b16 %v2199, %v2191
    %v2304 = vpack.c.b16 %v2200, %v2192
    %v2305 = vpack.c.b16 %v2201, %v2193
    %v2306 = vpack.c.b16 %v2202, %v2194
    %v2307 = vpack.c.b16 %v2203, %v2195
    %v2308 = vpack.c.b16 %v2212, %v2204
    %v2309 = vpack.c.b16 %v2213, %v2205
    %v2310 = vpack.c.b16 %v2214, %v2206
    %v2311 = vpack.c.b16 %v2215, %v2207
    %v2312 = vpack.c.b16 %v2216, %v2208
    %v2313 = vpack.c.b16 %v2217, %v2209
    %v2314 = vpack.c.b16 %v2218, %v2210
    %v2315 = vpack.c.b16 %v2219, %v2211
    %v2316 = vpack.c.b16 %v2228, %v2220
    %v2317 = vpack.c.b16 %v2229, %v2221
    %v2318 = vpack.c.b16 %v2230, %v2222
    %v2319 = vpack.c.b16 %v2231, %v2223
    %v2320 = vpack.c.b16 %v2232, %v2224
    %v2321 = vpack.c.b16 %v2233, %v2225
    %v2322 = vpack.c.b16 %v2234, %v2226
    %v2323 = vpack.c.b16 %v2235, %v2227
    %v2324 = vpack.c.b16 %v2244, %v2236
    %v2325 = vpack.c.b16 %v2245, %v2237
    %v2326 = vpack.c.b16 %v2246, %v2238
    %v2327 = vpack.c.b16 %v2247, %v2239
    %v2328 = vpack.c.b16 %v2248, %v2240
    %v2329 = vpack.c.b16 %v2249, %v2241
    %v2330 = vpack.c.b16 %v2250, %v2242
    %v2331 = vpack.c.b16 %v2251, %v2243
    %v2332 = vpack.c.b16 %v2260, %v2252
    %v2333 = vpack.c.b16 %v2261, %v2253
    %v2334 = vpack.c.b16 %v2262, %v2254
    %v2335 = vpack.c.b16 %v2263, %v2255
    %v2336 = vpack.c.b16 %v2264, %v2256
    %v2337 = vpack.c.b16 %v2265, %v2257
    %v2338 = vpack.c.b16 %v2266, %v2258
    %v2339 = vpack.c.b16 %v2267, %v2259
    %v2340 = vpack.c.b16 %v2276, %v2268
    %v2341 = vpack.c.b16 %v2277, %v2269
    %v2342 = vpack.c.b16 %v2278, %v2270
    %v2343 = vpack.c.b16 %v2279, %v2271
    %v2344 = vpack.c.b16 %v2280, %v2272
    %v2345 = vpack.c.b16 %v2281, %v2273
    %v2346 = vpack.c.b16 %v2282, %v2274
    %v2347 = vpack.c.b16 %v2283, %v2275
    %2412 = vmatprep.subr.bf16.mxu0 %v2285
    %2413 = vmatpush1.bf16.msra.mxu0 %v2284
    %2414 = vmatprep.subr.bf16.mxu0 %v2293
    %2415 = vmatpush1.bf16.msra.mxu0 %v2292
    %2416 = vmatprep.subr.bf16.mxu0 %v2301
    %2417 = vmatpush1.bf16.msra.mxu0 %v2300
    %2418 = vmatprep.subr.bf16.mxu0 %v2309
    %2419 = vmatpush1.bf16.msra.mxu0 %v2308
    %2420 = vmatprep.subr.bf16.mxu0 %v2317
    %2421 = vmatpush1.bf16.msra.mxu0 %v2316
    %2422 = vmatprep.subr.bf16.mxu0 %v2325
    %2423 = vmatpush1.bf16.msra.mxu0 %v2324
    %2424 = vmatprep.subr.bf16.mxu0 %v2333
    %2425 = vmatpush1.bf16.msra.mxu0 %v2332
    %2426 = vmatprep.subr.bf16.mxu0 %v2341
    %2427 = vmatpush1.bf16.msra.mxu0 %v2340
    %2428 = vmatprep.subr.bf16.mxu0 0
    %2429 = vmatpush1.bf16.msra.mxu0 0
    %2430 = vmatprep.subr.bf16.mxu0 0
    %2431 = vmatpush1.bf16.msra.mxu0 0
    %2432 = vmatprep.subr.bf16.mxu0 0
    %2433 = vmatpush1.bf16.msra.mxu0 0
    %2434 = vmatprep.subr.bf16.mxu0 0
    %2435 = vmatpush1.bf16.msra.mxu0 0
    %2436 = vmatprep.subr.bf16.mxu0 0
    %2437 = vmatpush1.bf16.msra.mxu0 0
    %2438 = vmatprep.subr.bf16.mxu0 0
    %2439 = vmatpush1.bf16.msra.mxu0 0
    %2440 = vmatprep.subr.bf16.mxu0 0
    %2441 = vmatpush1.bf16.msra.mxu0 0
    %2442 = vmatprep.subr.bf16.mxu0 0
    %2443 = vmatpush1.bf16.msra.mxu0 0
    %2444 = vmatprep.mubr.bf16.mxu0 0
    %2445 = vmatmul.mubr.bf16.gmra.mrb[0].mxu0 %v1978
    %v2446 = vpop.f32.mrb[0].mxu0
    %v2447 = vadd.f32 %v2055, %v2446
    %v2448 = vpop.f32.mrb[0].mxu0
    %v2449 = vadd.f32 %v2059, %v2448
    %v2450 = vpop.f32.mrb[0].mxu0
    %v2451 = vadd.f32 %v2055, %v2450
    %v2452 = vpop.f32.mrb[0].mxu0
    %v2453 = vadd.f32 %v2059, %v2452
    %2454 = vmatprep.mubr.bf16.mxu0 0
    %2455 = vmatmul.mubr.bf16.gmra.mrb[0].mxu0 %v1979
    %v2456 = vpop.f32.mrb[0].mxu0
    %v2457 = vadd.f32 %v2055, %v2456
    %v2458 = vpop.f32.mrb[0].mxu0
    %v2459 = vadd.f32 %v2059, %v2458
    %v2460 = vpop.f32.mrb[0].mxu0
    %v2461 = vadd.f32 %v2055, %v2460
    %v2462 = vpop.f32.mrb[0].mxu0
    %v2463 = vadd.f32 %v2059, %v2462
    %2464 = vmatprep.mubr.bf16.mxu0 0
    %2465 = vmatmul.mubr.bf16.gmra.mrb[0].mxu0 %v1980
    %v2466 = vpop.f32.mrb[0].mxu0
    %v2467 = vadd.f32 %v2055, %v2466
    %v2468 = vpop.f32.mrb[0].mxu0
    %v2469 = vadd.f32 %v2059, %v2468
    %v2470 = vpop.f32.mrb[0].mxu0
    %v2471 = vadd.f32 %v2055, %v2470
    %v2472 = vpop.f32.mrb[0].mxu0
    %v2473 = vadd.f32 %v2059, %v2472
    %2474 = vmatprep.mubr.bf16.mxu0 0
    %2475 = vmatmul.mubr.bf16.gmra.mrb[0].mxu0 %v1981
    %v2476 = vpop.f32.mrb[0].mxu0
    %v2477 = vadd.f32 %v2055, %v2476
    %v2478 = vpop.f32.mrb[0].mxu0
    %v2479 = vadd.f32 %v2059, %v2478
    %v2480 = vpop.f32.mrb[0].mxu0
    %v2481 = vadd.f32 %v2055, %v2480
    %v2482 = vpop.f32.mrb[0].mxu0
    %v2483 = vadd.f32 %v2059, %v2482
    %2484 = vmatprep.mubr.bf16.mxu0 0
    %2485 = vmatmul.mubr.bf16.gmra.mrb[0].mxu0 %v1982
    %v2486 = vpop.f32.mrb[0].mxu0
    %v2487 = vadd.f32 %v2055, %v2486
    %v2488 = vpop.f32.mrb[0].mxu0
    %v2489 = vadd.f32 %v2059, %v2488
    %v2490 = vpop.f32.mrb[0].mxu0
    %v2491 = vadd.f32 %v2055, %v2490
    %v2492 = vpop.f32.mrb[0].mxu0
    %v2493 = vadd.f32 %v2059, %v2492
    %2494 = vmatprep.mubr.bf16.mxu0 0
    %2495 = vmatmul.mubr.bf16.gmra.mrb[0].mxu0 %v1983
    %v2496 = vpop.f32.mrb[0].mxu0
    %v2497 = vadd.f32 %v2055, %v2496
    %v2498 = vpop.f32.mrb[0].mxu0
    %v2499 = vadd.f32 %v2059, %v2498
    %v2500 = vpop.f32.mrb[0].mxu0
    %v2501 = vadd.f32 %v2055, %v2500
    %v2502 = vpop.f32.mrb[0].mxu0
    %v2503 = vadd.f32 %v2059, %v2502
    %2504 = vmatprep.mubr.bf16.mxu0 0
    %2505 = vmatmul.mubr.bf16.gmra.mrb[0].mxu0 %v1984
    %v2506 = vpop.f32.mrb[0].mxu0
    %v2507 = vadd.f32 %v2055, %v2506
    %v2508 = vpop.f32.mrb[0].mxu0
    %v2509 = vadd.f32 %v2059, %v2508
    %v2510 = vpop.f32.mrb[0].mxu0
    %v2511 = vadd.f32 %v2055, %v2510
    %v2512 = vpop.f32.mrb[0].mxu0
    %v2513 = vadd.f32 %v2059, %v2512
    %2514 = vmatprep.mubr.bf16.mxu0 0
    %2515 = vmatmul.mubr.bf16.gmra.mrb[0].mxu0 %v1985
    %v2516 = vpop.f32.mrb[0].mxu0
    %v2517 = vadd.f32 %v2055, %v2516
    %v2518 = vpop.f32.mrb[0].mxu0
    %v2519 = vadd.f32 %v2059, %v2518
    %v2520 = vpop.f32.mrb[0].mxu0
    %v2521 = vadd.f32 %v2055, %v2520
    %v2522 = vpop.f32.mrb[0].mxu0
    %v2523 = vadd.f32 %v2059, %v2522
    %2524 = vdwg.mxu0
    %2525 = vmatprep.subr.bf16.mxu0 %v2287
    %2526 = vmatpush1.bf16.msra.mxu0 %v2286
    %2527 = vmatprep.subr.bf16.mxu0 %v2295
    %2528 = vmatpush1.bf16.msra.mxu0 %v2294
    %2529 = vmatprep.subr.bf16.mxu0 %v2303
    %2530 = vmatpush1.bf16.msra.mxu0 %v2302
    %2531 = vmatprep.subr.bf16.mxu0 %v2311
    %2532 = vmatpush1.bf16.msra.mxu0 %v2310
    %2533 = vmatprep.subr.bf16.mxu0 %v2319
    %2534 = vmatpush1.bf16.msra.mxu0 %v2318
    %2535 = vmatprep.subr.bf16.mxu0 %v2327
    %2536 = vmatpush1.bf16.msra.mxu0 %v2326
    %2537 = vmatprep.subr.bf16.mxu0 %v2335
    %2538 = vmatpush1.bf16.msra.mxu0 %v2334
    %2539 = vmatprep.subr.bf16.mxu0 %v2343
    %2540 = vmatpush1.bf16.msra.mxu0 %v2342
    %2541 = vmatprep.subr.bf16.mxu0 0
    %2542 = vmatpush1.bf16.msra.mxu0 0
    %2543 = vmatprep.subr.bf16.mxu0 0
    %2544 = vmatpush1.bf16.msra.mxu0 0
    %2545 = vmatprep.subr.bf16.mxu0 0
    %2546 = vmatpush1.bf16.msra.mxu0 0
    %2547 = vmatprep.subr.bf16.mxu0 0
    %2548 = vmatpush1.bf16.msra.mxu0 0
    %2549 = vmatprep.subr.bf16.mxu0 0
    %2550 = vmatpush1.bf16.msra.mxu0 0
    %2551 = vmatprep.subr.bf16.mxu0 0
    %2552 = vmatpush1.bf16.msra.mxu0 0
    %2553 = vmatprep.subr.bf16.mxu0 0
    %2554 = vmatpush1.bf16.msra.mxu0 0
    %2555 = vmatprep.subr.bf16.mxu0 0
    %2556 = vmatpush1.bf16.msra.mxu0 0
    %2557 = vmatprep.mubr.bf16.mxu0 0
    %2558 = vmatmul.mubr.bf16.gmra.mrb[0].mxu0 %v1978
    %v2559 = vpop.f32.mrb[0].mxu0
    %v2560 = vadd.f32 %v2063, %v2559
    %v2561 = vpop.f32.mrb[0].mxu0
    %v2562 = vadd.f32 %v2067, %v2561
    %v2563 = vpop.f32.mrb[0].mxu0
    %v2564 = vadd.f32 %v2063, %v2563
    %v2565 = vpop.f32.mrb[0].mxu0
    %v2566 = vadd.f32 %v2067, %v2565
    %2567 = vmatprep.mubr.bf16.mxu0 0
    %2568 = vmatmul.mubr.bf16.gmra.mrb[0].mxu0 %v1979
    %v2569 = vpop.f32.mrb[0].mxu0
    %v2570 = vadd.f32 %v2063, %v2569
    %v2571 = vpop.f32.mrb[0].mxu0
    %v2572 = vadd.f32 %v2067, %v2571
    %v2573 = vpop.f32.mrb[0].mxu0
    %v2574 = vadd.f32 %v2063, %v2573
    %v2575 = vpop.f32.mrb[0].mxu0
    %v2576 = vadd.f32 %v2067, %v2575
    %2577 = vmatprep.mubr.bf16.mxu0 0
    %2578 = vmatmul.mubr.bf16.gmra.mrb[0].mxu0 %v1980
    %v2579 = vpop.f32.mrb[0].mxu0
    %v2580 = vadd.f32 %v2063, %v2579
    %v2581 = vpop.f32.mrb[0].mxu0
    %v2582 = vadd.f32 %v2067, %v2581
    %v2583 = vpop.f32.mrb[0].mxu0
    %v2584 = vadd.f32 %v2063, %v2583
    %v2585 = vpop.f32.mrb[0].mxu0
    %v2586 = vadd.f32 %v2067, %v2585
    %2587 = vmatprep.mubr.bf16.mxu0 0
    %2588 = vmatmul.mubr.bf16.gmra.mrb[0].mxu0 %v1981
    %v2589 = vpop.f32.mrb[0].mxu0
    %v2590 = vadd.f32 %v2063, %v2589
    %v2591 = vpop.f32.mrb[0].mxu0
    %v2592 = vadd.f32 %v2067, %v2591
    %v2593 = vpop.f32.mrb[0].mxu0
    %v2594 = vadd.f32 %v2063, %v2593
    %v2595 = vpop.f32.mrb[0].mxu0
    %v2596 = vadd.f32 %v2067, %v2595
    %2597 = vmatprep.mubr.bf16.mxu0 0
    %2598 = vmatmul.mubr.bf16.gmra.mrb[0].mxu0 %v1982
    %v2599 = vpop.f32.mrb[0].mxu0
    %v2600 = vadd.f32 %v2063, %v2599
    %v2601 = vpop.f32.mrb[0].mxu0
    %v2602 = vadd.f32 %v2067, %v2601
    %v2603 = vpop.f32.mrb[0].mxu0
    %v2604 = vadd.f32 %v2063, %v2603
    %v2605 = vpop.f32.mrb[0].mxu0
    %v2606 = vadd.f32 %v2067, %v2605
    %2607 = vmatprep.mubr.bf16.mxu0 0
    %2608 = vmatmul.mubr.bf16.gmra.mrb[0].mxu0 %v1983
    %v2609 = vpop.f32.mrb[0].mxu0
    %v2610 = vadd.f32 %v2063, %v2609
    %v2611 = vpop.f32.mrb[0].mxu0
    %v2612 = vadd.f32 %v2067, %v2611
    %v2613 = vpop.f32.mrb[0].mxu0
    %v2614 = vadd.f32 %v2063, %v2613
    %v2615 = vpop.f32.mrb[0].mxu0
    %v2616 = vadd.f32 %v2067, %v2615
    %2617 = vmatprep.mubr.bf16.mxu0 0
    %2618 = vmatmul.mubr.bf16.gmra.mrb[0].mxu0 %v1984
    %v2619 = vpop.f32.mrb[0].mxu0
    %v2620 = vadd.f32 %v2063, %v2619
    %v2621 = vpop.f32.mrb[0].mxu0
    %v2622 = vadd.f32 %v2067, %v2621
    %v2623 = vpop.f32.mrb[0].mxu0
    %v2624 = vadd.f32 %v2063, %v2623
    %v2625 = vpop.f32.mrb[0].mxu0
    %v2626 = vadd.f32 %v2067, %v2625
    %2627 = vmatprep.mubr.bf16.mxu0 0
    %2628 = vmatmul.mubr.bf16.gmra.mrb[0].mxu0 %v1985
    %v2629 = vpop.f32.mrb[0].mxu0
    %v2630 = vadd.f32 %v2063, %v2629
    %v2631 = vpop.f32.mrb[0].mxu0
    %v2632 = vadd.f32 %v2067, %v2631
    %v2633 = vpop.f32.mrb[0].mxu0
    %v2634 = vadd.f32 %v2063, %v2633
    %v2635 = vpop.f32.mrb[0].mxu0
    %v2636 = vadd.f32 %v2067, %v2635
    %2637 = vdwg.mxu0
    %2638 = vmatprep.subr.bf16.mxu0 %v2289
    %2639 = vmatpush1.bf16.msra.mxu0 %v2288
    %2640 = vmatprep.subr.bf16.mxu0 %v2297
    %2641 = vmatpush1.bf16.msra.mxu0 %v2296
    %2642 = vmatprep.subr.bf16.mxu0 %v2305
    %2643 = vmatpush1.bf16.msra.mxu0 %v2304
    %2644 = vmatprep.subr.bf16.mxu0 %v2313
    %2645 = vmatpush1.bf16.msra.mxu0 %v2312
    %2646 = vmatprep.subr.bf16.mxu0 %v2321
    %2647 = vmatpush1.bf16.msra.mxu0 %v2320
    %2648 = vmatprep.subr.bf16.mxu0 %v2329
    %2649 = vmatpush1.bf16.msra.mxu0 %v2328
    %2650 = vmatprep.subr.bf16.mxu0 %v2337
    %2651 = vmatpush1.bf16.msra.mxu0 %v2336
    %2652 = vmatprep.subr.bf16.mxu0 %v2345
    %2653 = vmatpush1.bf16.msra.mxu0 %v2344
    %2654 = vmatprep.subr.bf16.mxu0 0
    %2655 = vmatpush1.bf16.msra.mxu0 0
    %2656 = vmatprep.subr.bf16.mxu0 0
    %2657 = vmatpush1.bf16.msra.mxu0 0
    %2658 = vmatprep.subr.bf16.mxu0 0
    %2659 = vmatpush1.bf16.msra.mxu0 0
    %2660 = vmatprep.subr.bf16.mxu0 0
    %2661 = vmatpush1.bf16.msra.mxu0 0
    %2662 = vmatprep.subr.bf16.mxu0 0
    %2663 = vmatpush1.bf16.msra.mxu0 0
    %2664 = vmatprep.subr.bf16.mxu0 0
    %2665 = vmatpush1.bf16.msra.mxu0 0
    %2666 = vmatprep.subr.bf16.mxu0 0
    %2667 = vmatpush1.bf16.msra.mxu0 0
    %2668 = vmatprep.subr.bf16.mxu0 0
    %2669 = vmatpush1.bf16.msra.mxu0 0
    %2670 = vmatprep.mubr.bf16.mxu0 0
    %2671 = vmatmul.mubr.bf16.gmra.mrb[0].mxu0 %v1978
    %v2672 = vpop.f32.mrb[0].mxu0
    %v2673 = vadd.f32 %v2071, %v2672
    %v2674 = vpop.f32.mrb[0].mxu0
    %v2675 = vadd.f32 %v2075, %v2674
    %v2676 = vpop.f32.mrb[0].mxu0
    %v2677 = vadd.f32 %v2071, %v2676
    %v2678 = vpop.f32.mrb[0].mxu0
    %v2679 = vadd.f32 %v2075, %v2678
    %2680 = vmatprep.mubr.bf16.mxu0 0
    %2681 = vmatmul.mubr.bf16.gmra.mrb[0].mxu0 %v1979
    %v2682 = vpop.f32.mrb[0].mxu0
    %v2683 = vadd.f32 %v2071, %v2682
    %v2684 = vpop.f32.mrb[0].mxu0
    %v2685 = vadd.f32 %v2075, %v2684
    %v2686 = vpop.f32.mrb[0].mxu0
    %v2687 = vadd.f32 %v2071, %v2686
    %v2688 = vpop.f32.mrb[0].mxu0
    %v2689 = vadd.f32 %v2075, %v2688
    %2690 = vmatprep.mubr.bf16.mxu0 0
    %2691 = vmatmul.mubr.bf16.gmra.mrb[0].mxu0 %v1980
    %v2692 = vpop.f32.mrb[0].mxu0
    %v2693 = vadd.f32 %v2071, %v2692
    %v2694 = vpop.f32.mrb[0].mxu0
    %v2695 = vadd.f32 %v2075, %v2694
    %v2696 = vpop.f32.mrb[0].mxu0
    %v2697 = vadd.f32 %v2071, %v2696
    %v2698 = vpop.f32.mrb[0].mxu0
    %v2699 = vadd.f32 %v2075, %v2698
    %2700 = vmatprep.mubr.bf16.mxu0 0
    %2701 = vmatmul.mubr.bf16.gmra.mrb[0].mxu0 %v1981
    %v2702 = vpop.f32.mrb[0].mxu0
    %v2703 = vadd.f32 %v2071, %v2702
    %v2704 = vpop.f32.mrb[0].mxu0
    %v2705 = vadd.f32 %v2075, %v2704
    %v2706 = vpop.f32.mrb[0].mxu0
    %v2707 = vadd.f32 %v2071, %v2706
    %v2708 = vpop.f32.mrb[0].mxu0
    %v2709 = vadd.f32 %v2075, %v2708
    %2710 = vmatprep.mubr.bf16.mxu0 0
    %2711 = vmatmul.mubr.bf16.gmra.mrb[0].mxu0 %v1982
    %v2712 = vpop.f32.mrb[0].mxu0
    %v2713 = vadd.f32 %v2071, %v2712
    %v2714 = vpop.f32.mrb[0].mxu0
    %v2715 = vadd.f32 %v2075, %v2714
    %v2716 = vpop.f32.mrb[0].mxu0
    %v2717 = vadd.f32 %v2071, %v2716
    %v2718 = vpop.f32.mrb[0].mxu0
    %v2719 = vadd.f32 %v2075, %v2718
    %2720 = vmatprep.mubr.bf16.mxu0 0
    %2721 = vmatmul.mubr.bf16.gmra.mrb[0].mxu0 %v1983
    %v2722 = vpop.f32.mrb[0].mxu0
    %v2723 = vadd.f32 %v2071, %v2722
    %v2724 = vpop.f32.mrb[0].mxu0
    %v2725 = vadd.f32 %v2075, %v2724
    %v2726 = vpop.f32.mrb[0].mxu0
    %v2727 = vadd.f32 %v2071, %v2726
    %v2728 = vpop.f32.mrb[0].mxu0
    %v2729 = vadd.f32 %v2075, %v2728
    %2730 = vmatprep.mubr.bf16.mxu0 0
    %2731 = vmatmul.mubr.bf16.gmra.mrb[0].mxu0 %v1984
    %v2732 = vpop.f32.mrb[0].mxu0
    %v2733 = vadd.f32 %v2071, %v2732
    %v2734 = vpop.f32.mrb[0].mxu0
    %v2735 = vadd.f32 %v2075, %v2734
    %v2736 = vpop.f32.mrb[0].mxu0
    %v2737 = vadd.f32 %v2071, %v2736
    %v2738 = vpop.f32.mrb[0].mxu0
    %v2739 = vadd.f32 %v2075, %v2738
    %2740 = vmatprep.mubr.bf16.mxu0 0
    %2741 = vmatmul.mubr.bf16.gmra.mrb[0].mxu0 %v1985
    %v2742 = vpop.f32.mrb[0].mxu0
    %v2743 = vadd.f32 %v2071, %v2742
    %v2744 = vpop.f32.mrb[0].mxu0
    %v2745 = vadd.f32 %v2075, %v2744
    %v2746 = vpop.f32.mrb[0].mxu0
    %v2747 = vadd.f32 %v2071, %v2746
    %v2748 = vpop.f32.mrb[0].mxu0
    %v2749 = vadd.f32 %v2075, %v2748
    %2750 = vdwg.mxu0
    %2751 = vmatprep.subr.bf16.mxu0 %v2291
    %2752 = vmatpush1.bf16.msra.mxu0 %v2290
    %2753 = vmatprep.subr.bf16.mxu0 %v2299
    %2754 = vmatpush1.bf16.msra.mxu0 %v2298
    %2755 = vmatprep.subr.bf16.mxu0 %v2307
    %2756 = vmatpush1.bf16.msra.mxu0 %v2306
    %2757 = vmatprep.subr.bf16.mxu0 %v2315
    %2758 = vmatpush1.bf16.msra.mxu0 %v2314
    %2759 = vmatprep.subr.bf16.mxu0 %v2323
    %2760 = vmatpush1.bf16.msra.mxu0 %v2322
    %2761 = vmatprep.subr.bf16.mxu0 %v2331
    %2762 = vmatpush1.bf16.msra.mxu0 %v2330
    %2763 = vmatprep.subr.bf16.mxu0 %v2339
    %2764 = vmatpush1.bf16.msra.mxu0 %v2338
    %2765 = vmatprep.subr.bf16.mxu0 %v2347
    %2766 = vmatpush1.bf16.msra.mxu0 %v2346
    %2767 = vmatprep.subr.bf16.mxu0 0
    %2768 = vmatpush1.bf16.msra.mxu0 0
    %2769 = vmatprep.subr.bf16.mxu0 0
    %2770 = vmatpush1.bf16.msra.mxu0 0
    %2771 = vmatprep.subr.bf16.mxu0 0
    %2772 = vmatpush1.bf16.msra.mxu0 0
    %2773 = vmatprep.subr.bf16.mxu0 0
    %2774 = vmatpush1.bf16.msra.mxu0 0
    %2775 = vmatprep.subr.bf16.mxu0 0
    %2776 = vmatpush1.bf16.msra.mxu0 0
    %2777 = vmatprep.subr.bf16.mxu0 0
    %2778 = vmatpush1.bf16.msra.mxu0 0
    %2779 = vmatprep.subr.bf16.mxu0 0
    %2780 = vmatpush1.bf16.msra.mxu0 0
    %2781 = vmatprep.subr.bf16.mxu0 0
    %2782 = vmatpush1.bf16.msra.mxu0 0
    %2783 = vmatprep.mubr.bf16.mxu0 0
    %2784 = vmatmul.mubr.bf16.gmra.mrb[0].mxu0 %v1978
    %v2785 = vpop.f32.mrb[0].mxu0
    %v2786 = vadd.f32 %v2079, %v2785
    %v2787 = vpop.f32.mrb[0].mxu0
    %v2788 = vadd.f32 %v2083, %v2787
    %v2789 = vpop.f32.mrb[0].mxu0
    %v2790 = vadd.f32 %v2079, %v2789
    %v2791 = vpop.f32.mrb[0].mxu0
    %v2792 = vadd.f32 %v2083, %v2791
    %2793 = vmatprep.mubr.bf16.mxu0 0
    %2794 = vmatmul.mubr.bf16.gmra.mrb[0].mxu0 %v1979
    %v2795 = vpop.f32.mrb[0].mxu0
    %v2796 = vadd.f32 %v2079, %v2795
    %v2797 = vpop.f32.mrb[0].mxu0
    %v2798 = vadd.f32 %v2083, %v2797
    %v2799 = vpop.f32.mrb[0].mxu0
    %v2800 = vadd.f32 %v2079, %v2799
    %v2801 = vpop.f32.mrb[0].mxu0
    %v2802 = vadd.f32 %v2083, %v2801
    %2803 = vmatprep.mubr.bf16.mxu0 0
    %2804 = vmatmul.mubr.bf16.gmra.mrb[0].mxu0 %v1980
    %v2805 = vpop.f32.mrb[0].mxu0
    %v2806 = vadd.f32 %v2079, %v2805
    %v2807 = vpop.f32.mrb[0].mxu0
    %v2808 = vadd.f32 %v2083, %v2807
    %v2809 = vpop.f32.mrb[0].mxu0
    %v2810 = vadd.f32 %v2079, %v2809
    %v2811 = vpop.f32.mrb[0].mxu0
    %v2812 = vadd.f32 %v2083, %v2811
    %2813 = vmatprep.mubr.bf16.mxu0 0
    %2814 = vmatmul.mubr.bf16.gmra.mrb[0].mxu0 %v1981
    %v2815 = vpop.f32.mrb[0].mxu0
    %v2816 = vadd.f32 %v2079, %v2815
    %v2817 = vpop.f32.mrb[0].mxu0
    %v2818 = vadd.f32 %v2083, %v2817
    %v2819 = vpop.f32.mrb[0].mxu0
    %v2820 = vadd.f32 %v2079, %v2819
    %v2821 = vpop.f32.mrb[0].mxu0
    %v2822 = vadd.f32 %v2083, %v2821
    %2823 = vmatprep.mubr.bf16.mxu0 0
    %2824 = vmatmul.mubr.bf16.gmra.mrb[0].mxu0 %v1982
    %v2825 = vpop.f32.mrb[0].mxu0
    %v2826 = vadd.f32 %v2079, %v2825
    %v2827 = vpop.f32.mrb[0].mxu0
    %v2828 = vadd.f32 %v2083, %v2827
    %v2829 = vpop.f32.mrb[0].mxu0
    %v2830 = vadd.f32 %v2079, %v2829
    %v2831 = vpop.f32.mrb[0].mxu0
    %v2832 = vadd.f32 %v2083, %v2831
    %2833 = vmatprep.mubr.bf16.mxu0 0
    %2834 = vmatmul.mubr.bf16.gmra.mrb[0].mxu0 %v1983
    %v2835 = vpop.f32.mrb[0].mxu0
    %v2836 = vadd.f32 %v2079, %v2835
    %v2837 = vpop.f32.mrb[0].mxu0
    %v2838 = vadd.f32 %v2083, %v2837
    %v2839 = vpop.f32.mrb[0].mxu0
    %v2840 = vadd.f32 %v2079, %v2839
    %v2841 = vpop.f32.mrb[0].mxu0
    %v2842 = vadd.f32 %v2083, %v2841
    %2843 = vmatprep.mubr.bf16.mxu0 0
    %2844 = vmatmul.mubr.bf16.gmra.mrb[0].mxu0 %v1984
    %v2845 = vpop.f32.mrb[0].mxu0
    %v2846 = vadd.f32 %v2079, %v2845
    %v2847 = vpop.f32.mrb[0].mxu0
    %v2848 = vadd.f32 %v2083, %v2847
    %v2849 = vpop.f32.mrb[0].mxu0
    %v2850 = vadd.f32 %v2079, %v2849
    %v2851 = vpop.f32.mrb[0].mxu0
    %v2852 = vadd.f32 %v2083, %v2851
    %2853 = vmatprep.mubr.bf16.mxu0 0
    %2854 = vmatmul.mubr.bf16.gmra.mrb[0].mxu0 %v1985
    %v2855 = vpop.f32.mrb[0].mxu0
    %v2856 = vadd.f32 %v2079, %v2855
    %v2857 = vpop.f32.mrb[0].mxu0
    %v2858 = vadd.f32 %v2083, %v2857
    %v2859 = vpop.f32.mrb[0].mxu0
    %v2860 = vadd.f32 %v2079, %v2859
    %v2861 = vpop.f32.mrb[0].mxu0
    %v2862 = vadd.f32 %v2083, %v2861
    %2863 = vdwg.mxu0
    %2864 = vst [vmem:[#allocation14] sm:$0xff] %v2447
    %2865 = vst [vmem:[#allocation14 + $0x8] sm:$0xff] %v2449
    %2866 = vst [vmem:[#allocation14 + $0x10] sm:$0xff] %v2560
    %2867 = vst [vmem:[#allocation14 + $0x18] sm:$0xff] %v2562
    %2868 = vst [vmem:[#allocation14 + $0x20] sm:$0xff] %v2673
    %2869 = vst [vmem:[#allocation14 + $0x28] sm:$0xff] %v2675
    %2870 = vst [vmem:[#allocation14 + $0x30] sm:$0xff] %v2786
    %2871 = vst [vmem:[#allocation14 + $0x38] sm:$0xff] %v2788
    %2872 = vst [vmem:[#allocation14 + $0x40] sm:$0xff] %v2451
    %2873 = vst [vmem:[#allocation14 + $0x48] sm:$0xff] %v2453
    %2874 = vst [vmem:[#allocation14 + $0x50] sm:$0xff] %v2564
    %2875 = vst [vmem:[#allocation14 + $0x58] sm:$0xff] %v2566
    %2876 = vst [vmem:[#allocation14 + $0x60] sm:$0xff] %v2677
    %2877 = vst [vmem:[#allocation14 + $0x68] sm:$0xff] %v2679
    %2878 = vst [vmem:[#allocation14 + $0x70] sm:$0xff] %v2790
    %2879 = vst [vmem:[#allocation14 + $0x78] sm:$0xff] %v2792
    %2880 = vst [vmem:[#allocation14 + $0x80] sm:$0xff] %v2457
    %2881 = vst [vmem:[#allocation14 + $0x88] sm:$0xff] %v2459
    %2882 = vst [vmem:[#allocation14 + $0x90] sm:$0xff] %v2570
    %2883 = vst [vmem:[#allocation14 + $0x98] sm:$0xff] %v2572
    %2884 = vst [vmem:[#allocation14 + $0xa0] sm:$0xff] %v2683
    %2885 = vst [vmem:[#allocation14 + $0xa8] sm:$0xff] %v2685
    %2886 = vst [vmem:[#allocation14 + $0xb0] sm:$0xff] %v2796
    %2887 = vst [vmem:[#allocation14 + $0xb8] sm:$0xff] %v2798
    %2888 = vst [vmem:[#allocation14 + $0xc0] sm:$0xff] %v2461
    %2889 = vst [vmem:[#allocation14 + $0xc8] sm:$0xff] %v2463
    %2890 = vst [vmem:[#allocation14 + $0xd0] sm:$0xff] %v2574
    %2891 = vst [vmem:[#allocation14 + $0xd8] sm:$0xff] %v2576
    %2892 = vst [vmem:[#allocation14 + $0xe0] sm:$0xff] %v2687
    %2893 = vst [vmem:[#allocation14 + $0xe8] sm:$0xff] %v2689
    %2894 = vst [vmem:[#allocation14 + $0xf0] sm:$0xff] %v2800
    %2895 = vst [vmem:[#allocation14 + $0xf8] sm:$0xff] %v2802
    %2896 = vst [vmem:[#allocation14 + $0x100] sm:$0xff] %v2467
    %2897 = vst [vmem:[#allocation14 + $0x108] sm:$0xff] %v2469
    %2898 = vst [vmem:[#allocation14 + $0x110] sm:$0xff] %v2580
    %2899 = vst [vmem:[#allocation14 + $0x118] sm:$0xff] %v2582
    %2900 = vst [vmem:[#allocation14 + $0x120] sm:$0xff] %v2693
    %2901 = vst [vmem:[#allocation14 + $0x128] sm:$0xff] %v2695
    %2902 = vst [vmem:[#allocation14 + $0x130] sm:$0xff] %v2806
    %2903 = vst [vmem:[#allocation14 + $0x138] sm:$0xff] %v2808
    %2904 = vst [vmem:[#allocation14 + $0x140] sm:$0xff] %v2471
    %2905 = vst [vmem:[#allocation14 + $0x148] sm:$0xff] %v2473
    %2906 = vst [vmem:[#allocation14 + $0x150] sm:$0xff] %v2584
    %2907 = vst [vmem:[#allocation14 + $0x158] sm:$0xff] %v2586
    %2908 = vst [vmem:[#allocation14 + $0x160] sm:$0xff] %v2697
    %2909 = vst [vmem:[#allocation14 + $0x168] sm:$0xff] %v2699
    %2910 = vst [vmem:[#allocation14 + $0x170] sm:$0xff] %v2810
    %2911 = vst [vmem:[#allocation14 + $0x178] sm:$0xff] %v2812
    %2912 = vst [vmem:[#allocation14 + $0x180] sm:$0xff] %v2477
    %2913 = vst [vmem:[#allocation14 + $0x188] sm:$0xff] %v2479
    %2914 = vst [vmem:[#allocation14 + $0x190] sm:$0xff] %v2590
    %2915 = vst [vmem:[#allocation14 + $0x198] sm:$0xff] %v2592
    %2916 = vst [vmem:[#allocation14 + $0x1a0] sm:$0xff] %v2703
    %2917 = vst [vmem:[#allocation14 + $0x1a8] sm:$0xff] %v2705
    %2918 = vst [vmem:[#allocation14 + $0x1b0] sm:$0xff] %v2816
    %2919 = vst [vmem:[#allocation14 + $0x1b8] sm:$0xff] %v2818
    %2920 = vst [vmem:[#allocation14 + $0x1c0] sm:$0xff] %v2481
    %2921 = vst [vmem:[#allocation14 + $0x1c8] sm:$0xff] %v2483
    %2922 = vst [vmem:[#allocation14 + $0x1d0] sm:$0xff] %v2594
    %2923 = vst [vmem:[#allocation14 + $0x1d8] sm:$0xff] %v2596
    %2924 = vst [vmem:[#allocation14 + $0x1e0] sm:$0xff] %v2707
    %2925 = vst [vmem:[#allocation14 + $0x1e8] sm:$0xff] %v2709
    %2926 = vst [vmem:[#allocation14 + $0x1f0] sm:$0xff] %v2820
    %2927 = vst [vmem:[#allocation14 + $0x1f8] sm:$0xff] %v2822
    %2928 = vst [vmem:[#allocation14 + $0x200] sm:$0xff] %v2487
    %2929 = vst [vmem:[#allocation14 + $0x208] sm:$0xff] %v2489
    %2930 = vst [vmem:[#allocation14 + $0x210] sm:$0xff] %v2600
    %2931 = vst [vmem:[#allocation14 + $0x218] sm:$0xff] %v2602
    %2932 = vst [vmem:[#allocation14 + $0x220] sm:$0xff] %v2713
    %2933 = vst [vmem:[#allocation14 + $0x228] sm:$0xff] %v2715
    %2934 = vst [vmem:[#allocation14 + $0x230] sm:$0xff] %v2826
    %2935 = vst [vmem:[#allocation14 + $0x238] sm:$0xff] %v2828
    %2936 = vst [vmem:[#allocation14 + $0x240] sm:$0xff] %v2491
    %2937 = vst [vmem:[#allocation14 + $0x248] sm:$0xff] %v2493
    %2938 = vst [vmem:[#allocation14 + $0x250] sm:$0xff] %v2604
    %2939 = vst [vmem:[#allocation14 + $0x258] sm:$0xff] %v2606
    %2940 = vst [vmem:[#allocation14 + $0x260] sm:$0xff] %v2717
    %2941 = vst [vmem:[#allocation14 + $0x268] sm:$0xff] %v2719
    %2942 = vst [vmem:[#allocation14 + $0x270] sm:$0xff] %v2830
    %2943 = vst [vmem:[#allocation14 + $0x278] sm:$0xff] %v2832
    %2944 = vst [vmem:[#allocation14 + $0x280] sm:$0xff] %v2497
    %2945 = vst [vmem:[#allocation14 + $0x288] sm:$0xff] %v2499
    %2946 = vst [vmem:[#allocation14 + $0x290] sm:$0xff] %v2610
    %2947 = vst [vmem:[#allocation14 + $0x298] sm:$0xff] %v2612
    %2948 = vst [vmem:[#allocation14 + $0x2a0] sm:$0xff] %v2723
    %2949 = vst [vmem:[#allocation14 + $0x2a8] sm:$0xff] %v2725
    %2950 = vst [vmem:[#allocation14 + $0x2b0] sm:$0xff] %v2836
    %2951 = vst [vmem:[#allocation14 + $0x2b8] sm:$0xff] %v2838
    %2952 = vst [vmem:[#allocation14 + $0x2c0] sm:$0xff] %v2501
    %2953 = vst [vmem:[#allocation14 + $0x2c8] sm:$0xff] %v2503
    %2954 = vst [vmem:[#allocation14 + $0x2d0] sm:$0xff] %v2614
    %2955 = vst [vmem:[#allocation14 + $0x2d8] sm:$0xff] %v2616
    %2956 = vst [vmem:[#allocation14 + $0x2e0] sm:$0xff] %v2727
    %2957 = vst [vmem:[#allocation14 + $0x2e8] sm:$0xff] %v2729
    %2958 = vst [vmem:[#allocation14 + $0x2f0] sm:$0xff] %v2840
    %2959 = vst [vmem:[#allocation14 + $0x2f8] sm:$0xff] %v2842
    %2960 = vst [vmem:[#allocation14 + $0x300] sm:$0xff] %v2507
    %2961 = vst [vmem:[#allocation14 + $0x308] sm:$0xff] %v2509
    %2962 = vst [vmem:[#allocation14 + $0x310] sm:$0xff] %v2620
    %2963 = vst [vmem:[#allocation14 + $0x318] sm:$0xff] %v2622
    %2964 = vst [vmem:[#allocation14 + $0x320] sm:$0xff] %v2733
    %2965 = vst [vmem:[#allocation14 + $0x328] sm:$0xff] %v2735
    %2966 = vst [vmem:[#allocation14 + $0x330] sm:$0xff] %v2846
    %2967 = vst [vmem:[#allocation14 + $0x338] sm:$0xff] %v2848
    %2968 = vst [vmem:[#allocation14 + $0x340] sm:$0xff] %v2511
    %2969 = vst [vmem:[#allocation14 + $0x348] sm:$0xff] %v2513
    %2970 = vst [vmem:[#allocation14 + $0x350] sm:$0xff] %v2624
    %2971 = vst [vmem:[#allocation14 + $0x358] sm:$0xff] %v2626
    %2972 = vst [vmem:[#allocation14 + $0x360] sm:$0xff] %v2737
    %2973 = vst [vmem:[#allocation14 + $0x368] sm:$0xff] %v2739
    %2974 = vst [vmem:[#allocation14 + $0x370] sm:$0xff] %v2850
    %2975 = vst [vmem:[#allocation14 + $0x378] sm:$0xff] %v2852
    %2976 = vst [vmem:[#allocation14 + $0x380] sm:$0xff] %v2517
    %2977 = vst [vmem:[#allocation14 + $0x388] sm:$0xff] %v2519
    %2978 = vst [vmem:[#allocation14 + $0x390] sm:$0xff] %v2630
    %2979 = vst [vmem:[#allocation14 + $0x398] sm:$0xff] %v2632
    %2980 = vst [vmem:[#allocation14 + $0x3a0] sm:$0xff] %v2743
    %2981 = vst [vmem:[#allocation14 + $0x3a8] sm:$0xff] %v2745
    %2982 = vst [vmem:[#allocation14 + $0x3b0] sm:$0xff] %v2856
    %2983 = vst [vmem:[#allocation14 + $0x3b8] sm:$0xff] %v2858
    %2984 = vst [vmem:[#allocation14 + $0x3c0] sm:$0xff] %v2521
    %2985 = vst [vmem:[#allocation14 + $0x3c8] sm:$0xff] %v2523
    %2986 = vst [vmem:[#allocation14 + $0x3d0] sm:$0xff] %v2634
    %2987 = vst [vmem:[#allocation14 + $0x3d8] sm:$0xff] %v2636
    %2988 = vst [vmem:[#allocation14 + $0x3e0] sm:$0xff] %v2747
    %2989 = vst [vmem:[#allocation14 + $0x3e8] sm:$0xff] %v2749
    %2990 = vst [vmem:[#allocation14 + $0x3f0] sm:$0xff] %v2860
    %2991 = vst [vmem:[#allocation14 + $0x3f8] sm:$0xff] %v2862
    // Predicated region
    $region66: #{tpu_custom_call.1} parent=1 // pred_check
      _
    $region67: #{tpu_custom_call.1} parent=1 // pred_check_branch
      %2993 = sbr.rel (0) target = $region69
    $region68: #{tpu_custom_call.1} parent=1 // pred_region
      %s2995 = ssub.s32 4096, 4096
      %2996 = vsyncadd [#allocation4], %s2995
      %s2997 = sshll.u32 [#allocation13], 4
      %s2998 = int_to_ptr.vmem [resolvable:$true] %s2997
      %3003 = dma.vmem_to_hbm [thread:$0]  %s2998, 4096, %s10, [#allocation4], 256, 256, 16
    $region69: #{tpu_custom_call.1} parent=1 // pred_fallthru
      _
    // Predicated region
    $region70: #{tpu_custom_call.1} parent=1 // pred_check
      _
    $region71: #{tpu_custom_call.1} parent=1 // pred_check_branch
      %3005 = sbr.rel (0) target = $region73
    $region72: #{tpu_custom_call.1} parent=1 // pred_region
      %s3007 = ssub.s32 16384, 16384
      %3008 = vsyncadd [#allocation15], %s3007
      %s3009 = sshll.u32 [#allocation14], 4
      %s3010 = int_to_ptr.vmem [resolvable:$true] %s3009
      %3015 = dma.vmem_to_hbm [thread:$0]  %s3010, 16384, %s11, [#allocation15], 1024, 1024, 64
    $region73: #{tpu_custom_call.1} parent=1 // pred_fallthru
      _
    // Predicated region
    $region74: #{tpu_custom_call.1} parent=1 // pred_check
      _
    $region75: #{tpu_custom_call.1} parent=1 // pred_check_branch
      %3017 = sbr.rel (0) target = $region77
    $region76: #{tpu_custom_call.1} parent=1 // pred_region
      %3018 = dma.done [#allocation4], 4096
    $region77: #{tpu_custom_call.1} parent=1 // pred_fallthru
      _
    // Predicated region
    $region78: #{tpu_custom_call.1} parent=1 // pred_check
      _
    $region79: #{tpu_custom_call.1} parent=1 // pred_check_branch
      %3020 = sbr.rel (0) target = $region81
    $region80: #{tpu_custom_call.1} parent=1 // pred_region
      %3021 = dma.done [#allocation15], 16384
    $region81: #{tpu_custom_call.1} parent=1 // pred_fallthru
      _
    %3022 = vsyncpa [#allocation3], 1
    %3023 = vsyncpa [#allocation6], 1
    %3024 = vsyncpa [#allocation9], 1
    %3025 = vsyncpa [#allocation12], 1
    %3026 = vsyncpa [#allocation4], 1
    %3027 = vsyncpa [#allocation15], 1

</llo_original>
